<compile_context>
chip_gen: v7x
topology: tpu7x:2x2x1
jax: 0.10.0
libtpu: 0.0.40
codegen_flags: <defaults>
</compile_context>

<pallas_src>
import functools

import jax
import jax.numpy as jnp
import numpy as np
from jax.experimental import pallas as pl
from jax.experimental.pallas import tpu as pltpu


def _round_up(x, m):
    return ((x + m - 1) // m) * m


def _mha_kernel(x_ref, w_ref, b_ref, t_ref, s_ref, e_ref, c_ref, o_ref, acc_ref,
                *, num_heads, head_size):
    A = num_heads * head_size
    hd = head_size

    # Fused QKV projection: one wide MXU matmul, f32 accumulate, f32 bias add.
    qkv = jnp.dot(x_ref[...], w_ref[...],
                  preferred_element_type=jnp.float32) + b_ref[...]
    q = qkv[:, 0 * A:1 * A]
    k = qkv[:, 1 * A:2 * A]
    v = qkv[:, 2 * A:3 * A]

    bcast_t = t_ref[...]    # (hd, A): T[d, g*hd+d] = 1   broadcast head vector
    seg_sum = s_ref[...]    # (A, nh): S[g*hd+d, g] = 1   per-head-segment sum
    prob_bc = e_ref[...]    # (nh, A): E[g, g*hd+d] = 1   broadcast probs
    head_sum = c_ref[...]   # (A, hd): C[g*hd+d, d] = 1   sum over heads

    # Per-token attention across the heads axis.  Cross-lane work is routed
    # through the MXU via the constant selectors; each head's context goes
    # straight into the VMEM accumulator so nothing stays live across
    # iterations of the (small, static) head loop.
    for h in range(num_heads):
        qh = q[:, h * hd:(h + 1) * hd]                                  # (TN, hd)
        q_exp = jnp.dot(qh, bcast_t, preferred_element_type=jnp.float32)  # (TN, A)
        scores = jnp.dot(q_exp * k, seg_sum,
                         preferred_element_type=jnp.float32)             # (TN, nh)
        m = jnp.max(scores, axis=-1, keepdims=True)
        e = jnp.exp(scores - m)
        probs = e * pl.reciprocal(jnp.sum(e, axis=-1, keepdims=True),
                                  approx=True)                           # EUP divide
        pb = jnp.dot(probs, prob_bc, preferred_element_type=jnp.float32)  # (TN, A)
        acc_ref[:, h * hd:(h + 1) * hd] = jnp.dot(
            pb * v, head_sum, preferred_element_type=jnp.float32)         # (TN, hd)

    # One full-width store per row tile.
    o_ref[...] = acc_ref[...].astype(o_ref.dtype)


def prepare_params(params, num_heads, *, matmul_dtype=None):
    """One-time parameter prep (hoisted out of the per-call path): fused QKV
    weight/bias plus the static 0/1 selector matrices used by the kernel."""
    A, D = params["wq"].shape
    assert A % num_heads == 0, "all_head_size must be divisible by num_heads"
    hd = A // num_heads

    w_qkv = jnp.concatenate(
        [params["wq"].T, params["wk"].T, params["wv"].T], axis=1)          # (D, 3A)
    b_qkv = jnp.concatenate(
        [params["bq"], params["bk"], params["bv"]])[None, :].astype(jnp.float32)
    if matmul_dtype is not None:
        w_qkv = w_qkv.astype(matmul_dtype)

    eye_h = np.eye(hd, dtype=np.float32)
    eye_n = np.eye(num_heads, dtype=np.float32)
    sel_t = jnp.asarray(np.tile(eye_h, (1, num_heads)))    # (hd, A)
    sel_s = jnp.asarray(np.repeat(eye_n, hd, axis=0))      # (A, nh)
    sel_e = jnp.asarray(np.repeat(eye_n, hd, axis=1))      # (nh, A)
    sel_c = jnp.asarray(np.tile(eye_h, (num_heads, 1)))    # (A, hd)

    return dict(w_qkv=w_qkv, b_qkv=b_qkv, sel_t=sel_t, sel_s=sel_s,
                sel_e=sel_e, sel_c=sel_c, num_heads=num_heads, head_size=hd,
                matmul_dtype=matmul_dtype)


def multi_head_attention(x, prep, *, tile_n=512):
    """x: (N, input_dim). prep: output of prepare_params (weights + selectors)."""
    N, D = x.shape
    num_heads = prep["num_heads"]
    hd = prep["head_size"]
    A = num_heads * hd
    matmul_dtype = prep["matmul_dtype"]

    x_in = x.astype(matmul_dtype) if matmul_dtype is not None else x
    in_isz = x_in.dtype.itemsize
    w_isz = prep["w_qkv"].dtype.itemsize
    out_isz = x.dtype.itemsize

    # Row granularity: 8 sublanes for f32, 16 for packed bf16 tiles.
    row_mult = 16 if x_in.dtype == jnp.bfloat16 else 8

    # Generation-aware VMEM budget (v7x: 64 MiB physical, v5e/v6e: 128 MiB).
    try:
        vmem_cap = pltpu.get_tpu_info().vmem_capacity_bytes
    except Exception:
        vmem_cap = 128 << 20
    budget = int(0.75 * vmem_cap)

    tile_n = max(row_mult, _round_up(tile_n, row_mult))
    TN = min(_round_up(N, row_mult), tile_n)
    # Prefer >= 2 grid steps so the "parallel" axis can shard across v7x's two
    # TensorCores (no effect on single-TC v5e/v6e).
    if pl.cdiv(N, TN) < 2:
        tn_half = _round_up(max(pl.cdiv(N, 2), 1), row_mult)
        if tn_half < TN:
            TN = tn_half

    sel_bytes = 4 * (hd * A + A * num_heads + num_heads * A + A * hd)

    def est_bytes(tn):
        return (2 * tn * D * in_isz                     # x double buffer
                + 2 * tn * A * out_isz                  # out double buffer
                + 2 * (D * 3 * A * w_isz + 3 * A * 4)   # fused W + bias buffers
                + 2 * sel_bytes                         # selector matrices
                + tn * A * 4                            # ctx accumulator scratch
                + 10 * tn * A * 4)                      # qkv / per-head f32 temps

    while TN > row_mult and est_bytes(TN) > budget:
        TN = max(row_mult, _round_up(TN // 2, row_mult))

    n_tiles = pl.cdiv(N, TN)
    N_pad = n_tiles * TN
    if N_pad != N:
        x_in = jnp.pad(x_in, ((0, N_pad - N), (0, 0)))

    vmem_limit = int(min(max(2 * est_bytes(TN), 16 << 20), budget))

    kernel = functools.partial(_mha_kernel, num_heads=num_heads, head_size=hd)

    inv = lambda i: (0, 0)  # grid-invariant operands (weights / selectors)

    # TODO(synk): for large input_dim / all_head_size the fused (D, 3A) weight
    # should be tiled over a reduction grid axis with an f32 accumulator; at
    # this module's sizes it fits a single VMEM block, so it is kept whole.
    out = pl.pallas_call(
        kernel,
        out_shape=jax.ShapeDtypeStruct((N_pad, A), x.dtype),
        grid=(n_tiles,),
        in_specs=[
            pl.BlockSpec((TN, D), lambda i: (i, 0)),       # x row tile
            pl.BlockSpec((D, 3 * A), inv),                 # fused QKV weight
            pl.BlockSpec((1, 3 * A), inv),                 # fused QKV bias
            pl.BlockSpec((hd, A), inv),                    # broadcast selector T
            pl.BlockSpec((A, num_heads), inv),             # segment-sum selector S
            pl.BlockSpec((num_heads, A), inv),             # prob-broadcast selector E
            pl.BlockSpec((A, hd), inv),                    # head-sum selector C
        ],
        out_specs=pl.BlockSpec((TN, A), lambda i: (i, 0)),
        scratch_shapes=[pltpu.VMEM((TN, A), jnp.float32)],
        compiler_params=pltpu.CompilerParams(
            dimension_semantics=("parallel",),
            vmem_limit_bytes=vmem_limit),
    )(x_in, prep["w_qkv"], prep["b_qkv"], prep["sel_t"], prep["sel_s"],
      prep["sel_e"], prep["sel_c"])

    return out[:N] if N_pad != N else out


def init_params(key, input_dim, num_heads):
    """Deterministic synthetic init, mirroring nn.Linear shapes (out, in)."""
    head_size = input_dim // num_heads
    if head_size == 0:
        num_heads = 1
        head_size = input_dim
    all_head_size = num_heads * head_size
    ks = jax.random.split(key, 6)
    scale = 1.0 / np.sqrt(input_dim)
    params = {
        "wq": jax.random.uniform(ks[0], (all_head_size, input_dim), jnp.float32, -scale, scale),
        "bq": jax.random.uniform(ks[1], (all_head_size,), jnp.float32, -scale, scale),
        "wk": jax.random.uniform(ks[2], (all_head_size, input_dim), jnp.float32, -scale, scale),
        "bk": jax.random.uniform(ks[3], (all_head_size,), jnp.float32, -scale, scale),
        "wv": jax.random.uniform(ks[4], (all_head_size, input_dim), jnp.float32, -scale, scale),
        "bv": jax.random.uniform(ks[5], (all_head_size,), jnp.float32, -scale, scale),
    }
    return params, num_heads, head_size


def reference_mha(x, params, num_heads, head_size):
    """Pure-JAX mirror of the PyTorch forward, for correctness check."""
    q = x @ params["wq"].T + params["bq"]
    k = x @ params["wk"].T + params["bk"]
    v = x @ params["wv"].T + params["bv"]
    N = x.shape[0]
    q = q.reshape(N, num_heads, head_size)
    k = k.reshape(N, num_heads, head_size)
    v = v.reshape(N, num_heads, head_size)
    # NOTE: no 1/sqrt(head_size) scaling — matches the PyTorch module exactly.
    scores = jnp.einsum("nhd,ngd->nhg", q, k)
    probs = jax.nn.softmax(scores, axis=-1)
    ctx = jnp.einsum("nhg,ngd->nhd", probs, v)
    return ctx.reshape(N, num_heads * head_size)


if __name__ == "__main__":
    input_dim = 32
    num_heads = 4
    seq = 8  # N tokens (the module flattens everything to (-1, input_dim))

    key = jax.random.PRNGKey(0)
    kx, kp, kx2 = jax.random.split(key, 3)
    x = jax.random.normal(kx, (seq, input_dim), jnp.float32)
    params, num_heads, head_size = init_params(kp, input_dim, num_heads)

    # One-time parameter prep (fused weights + selectors), reused across calls.
    prep_f32 = prepare_params(params, num_heads)

    # 1) Tiny shape from the module spec (single grid step), f32 projection.
    out = jax.block_until_ready(multi_head_attention(x, prep_f32))
    ref = reference_mha(x, params, num_heads, head_size)
    np.testing.assert_allclose(np.asarray(out), np.asarray(ref),
                               rtol=2e-3, atol=2e-3)

    # 2) Larger, non-multiple-of-tile token count: exercises the multi-step
    #    pipelined grid and the pad/slice remainder handling.
    n_big = 300
    x_big = jax.random.normal(kx2, (n_big, input_dim), jnp.float32)
    out_big = jax.block_until_ready(
        multi_head_attention(x_big, prep_f32, tile_n=128))
    ref_big = reference_mha(x_big, params, num_heads, head_size)
    np.testing.assert_allclose(np.asarray(out_big), np.asarray(ref_big),
                               rtol=2e-3, atol=2e-3)

    # 3) bf16 projection path (MXU-rate / DMA-byte option for v5e/v6e/v7x),
    #    looser tolerance; softmax/context math still runs in f32.
    prep_bf16 = prepare_params(params, num_heads, matmul_dtype=jnp.bfloat16)
    out_bf16 = jax.block_until_ready(
        multi_head_attention(x_big, prep_bf16, tile_n=128))
    np.testing.assert_allclose(np.asarray(out_bf16), np.asarray(ref_big),
                               rtol=5e-2, atol=5e-2)

    print("KERNEL_OK")
</pallas_src>

<mosaic_0001>
module attributes {stable_mosaic.version = 11 : i64} {
  func.func @_mha_kernel(%arg0: i32, %arg1: memref<8x32xf32, #tpu.memory_space<vmem>>, %arg2: memref<32x96xf32, #tpu.memory_space<vmem>>, %arg3: memref<1x96xf32, #tpu.memory_space<vmem>>, %arg4: memref<8x32xf32, #tpu.memory_space<vmem>>, %arg5: memref<32x4xf32, #tpu.memory_space<vmem>>, %arg6: memref<4x32xf32, #tpu.memory_space<vmem>>, %arg7: memref<32x8xf32, #tpu.memory_space<vmem>>, %arg8: memref<8x32xf32, #tpu.memory_space<vmem>>, %arg9: memref<8x32xf32, #tpu.memory_space<vmem>>) attributes {dimension_semantics = [#tpu.dimension_semantics<parallel>], iteration_bounds = array<i64: 1>, scalar_prefetch = 0 : i64, scratch_operands = 1 : i64, tpu.core_type = #tpu.core_type<tc>, window_params = [{transform_indices = @transform_0, window_bounds = array<i64: 8, 32>}, {pipeline_mode = #tpu.pipeline_mode<synchronous>, transform_indices = @transform_1, window_bounds = array<i64: 32, 96>}, {pipeline_mode = #tpu.pipeline_mode<synchronous>, transform_indices = @transform_2, window_bounds = array<i64: 1, 96>}, {pipeline_mode = #tpu.pipeline_mode<synchronous>, transform_indices = @transform_3, window_bounds = array<i64: 8, 32>}, {pipeline_mode = #tpu.pipeline_mode<synchronous>, transform_indices = @transform_4, window_bounds = array<i64: 32, 4>}, {pipeline_mode = #tpu.pipeline_mode<synchronous>, transform_indices = @transform_5, window_bounds = array<i64: 4, 32>}, {pipeline_mode = #tpu.pipeline_mode<synchronous>, transform_indices = @transform_6, window_bounds = array<i64: 32, 8>}, {transform_indices = @transform_7, window_bounds = array<i64: 8, 32>}]} {
    %c0 = arith.constant 0 : index
    %c0_0 = arith.constant 0 : index
    %0 = vector.load %arg1[%c0, %c0_0] : memref<8x32xf32, #tpu.memory_space<vmem>>, vector<8x32xf32>
    %c0_1 = arith.constant 0 : index
    %c0_2 = arith.constant 0 : index
    %1 = vector.load %arg2[%c0_1, %c0_2] : memref<32x96xf32, #tpu.memory_space<vmem>>, vector<32x96xf32>
    %cst = arith.constant dense<0.000000e+00> : vector<8x96xf32>
    %2 = tpu.matmul %0, %1, %cst {dimension_numbers = #tpu.dot_dimension_numbers<[1], [0], [0], [1], [0, 0, 1, 1], [], []>} : vector<8x32xf32>, vector<32x96xf32>, vector<8x96xf32> -> vector<8x96xf32>
    %c0_3 = arith.constant 0 : index
    %c0_4 = arith.constant 0 : index
    %3 = vector.load %arg3[%c0_3, %c0_4] : memref<1x96xf32, #tpu.memory_space<vmem>>, vector<1x96xf32>
    %4 = vector.broadcast %3 : vector<1x96xf32> to vector<8x96xf32>
    %5 = arith.addf %2, %4 : vector<8x96xf32>
    %6 = vector.extract_strided_slice %5 {offsets = [0, 0], sizes = [8, 32], strides = [1, 1]} : vector<8x96xf32> to vector<8x32xf32>
    %7 = vector.extract_strided_slice %5 {offsets = [0, 32], sizes = [8, 32], strides = [1, 1]} : vector<8x96xf32> to vector<8x32xf32>
    %8 = vector.extract_strided_slice %5 {offsets = [0, 64], sizes = [8, 32], strides = [1, 1]} : vector<8x96xf32> to vector<8x32xf32>
    %c0_5 = arith.constant 0 : index
    %c0_6 = arith.constant 0 : index
    %9 = vector.load %arg4[%c0_5, %c0_6] : memref<8x32xf32, #tpu.memory_space<vmem>>, vector<8x32xf32>
    %c0_7 = arith.constant 0 : index
    %c0_8 = arith.constant 0 : index
    %10 = vector.load %arg5[%c0_7, %c0_8] : memref<32x4xf32, #tpu.memory_space<vmem>>, vector<32x4xf32>
    %c0_9 = arith.constant 0 : index
    %c0_10 = arith.constant 0 : index
    %11 = vector.load %arg6[%c0_9, %c0_10] : memref<4x32xf32, #tpu.memory_space<vmem>>, vector<4x32xf32>
    %c0_11 = arith.constant 0 : index
    %c0_12 = arith.constant 0 : index
    %12 = vector.load %arg7[%c0_11, %c0_12] : memref<32x8xf32, #tpu.memory_space<vmem>>, vector<32x8xf32>
    %13 = vector.extract_strided_slice %6 {offsets = [0, 0], sizes = [8, 8], strides = [1, 1]} : vector<8x32xf32> to vector<8x8xf32>
    %cst_13 = arith.constant dense<0.000000e+00> : vector<8x32xf32>
    %14 = tpu.matmul %13, %9, %cst_13 {dimension_numbers = #tpu.dot_dimension_numbers<[1], [0], [0], [1], [0, 0, 1, 1], [], []>} : vector<8x8xf32>, vector<8x32xf32>, vector<8x32xf32> -> vector<8x32xf32>
    %15 = arith.mulf %14, %7 : vector<8x32xf32>
    %cst_14 = arith.constant dense<0.000000e+00> : vector<8x4xf32>
    %16 = tpu.matmul %15, %10, %cst_14 {dimension_numbers = #tpu.dot_dimension_numbers<[1], [0], [0], [1], [0, 0, 1, 1], [], []>} : vector<8x32xf32>, vector<32x4xf32>, vector<8x4xf32> -> vector<8x4xf32>
    %cst_15 = arith.constant dense<0xFF800000> : vector<8xf32>
    %17 = vector.multi_reduction <maximumf>, %16, %cst_15 [1] : vector<8x4xf32> to vector<8xf32>
    %18 = vector.shape_cast %17 : vector<8xf32> to vector<8x1xf32>
    %19 = vector.broadcast %18 : vector<8x1xf32> to vector<8x4xf32>
    %20 = arith.subf %16, %19 : vector<8x4xf32>
    %21 = math.exp %20 : vector<8x4xf32>
    %cst_16 = arith.constant dense<0.000000e+00> : vector<8xf32>
    %22 = vector.multi_reduction <add>, %21, %cst_16 [1] : vector<8x4xf32> to vector<8xf32>
    %23 = vector.shape_cast %22 : vector<8xf32> to vector<8x1xf32>
    %24 = tpu.reciprocal %23 {approx = true} : vector<8x1xf32> -> vector<8x1xf32>
    %25 = vector.broadcast %24 : vector<8x1xf32> to vector<8x4xf32>
    %26 = arith.mulf %21, %25 : vector<8x4xf32>
    %cst_17 = arith.constant dense<0.000000e+00> : vector<8x32xf32>
    %27 = tpu.matmul %26, %11, %cst_17 {dimension_numbers = #tpu.dot_dimension_numbers<[1], [0], [0], [1], [0, 0, 1, 1], [], []>} : vector<8x4xf32>, vector<4x32xf32>, vector<8x32xf32> -> vector<8x32xf32>
    %28 = arith.mulf %27, %8 : vector<8x32xf32>
    %cst_18 = arith.constant dense<0.000000e+00> : vector<8x8xf32>
    %29 = tpu.matmul %28, %12, %cst_18 {dimension_numbers = #tpu.dot_dimension_numbers<[1], [0], [0], [1], [0, 0, 1, 1], [], []>} : vector<8x32xf32>, vector<32x8xf32>, vector<8x8xf32> -> vector<8x8xf32>
    %c0_19 = arith.constant 0 : index
    %c0_20 = arith.constant 0 : index
    %30 = vector.load %arg9[%c0_19, %c0_20] : memref<8x32xf32, #tpu.memory_space<vmem>>, vector<8x8xf32>
    tpu.vector_store %arg9[%c0_19, %c0_20], %29 {strides = array<i32>} : memref<8x32xf32, #tpu.memory_space<vmem>>, vector<8x8xf32>,
    %31 = vector.extract_strided_slice %6 {offsets = [0, 8], sizes = [8, 8], strides = [1, 1]} : vector<8x32xf32> to vector<8x8xf32>
    %cst_21 = arith.constant dense<0.000000e+00> : vector<8x32xf32>
    %32 = tpu.matmul %31, %9, %cst_21 {dimension_numbers = #tpu.dot_dimension_numbers<[1], [0], [0], [1], [0, 0, 1, 1], [], []>} : vector<8x8xf32>, vector<8x32xf32>, vector<8x32xf32> -> vector<8x32xf32>
    %33 = arith.mulf %32, %7 : vector<8x32xf32>
    %cst_22 = arith.constant dense<0.000000e+00> : vector<8x4xf32>
    %34 = tpu.matmul %33, %10, %cst_22 {dimension_numbers = #tpu.dot_dimension_numbers<[1], [0], [0], [1], [0, 0, 1, 1], [], []>} : vector<8x32xf32>, vector<32x4xf32>, vector<8x4xf32> -> vector<8x4xf32>
    %cst_23 = arith.constant dense<0xFF800000> : vector<8xf32>
    %35 = vector.multi_reduction <maximumf>, %34, %cst_23 [1] : vector<8x4xf32> to vector<8xf32>
    %36 = vector.shape_cast %35 : vector<8xf32> to vector<8x1xf32>
    %37 = vector.broadcast %36 : vector<8x1xf32> to vector<8x4xf32>
    %38 = arith.subf %34, %37 : vector<8x4xf32>
    %39 = math.exp %38 : vector<8x4xf32>
    %cst_24 = arith.constant dense<0.000000e+00> : vector<8xf32>
    %40 = vector.multi_reduction <add>, %39, %cst_24 [1] : vector<8x4xf32> to vector<8xf32>
    %41 = vector.shape_cast %40 : vector<8xf32> to vector<8x1xf32>
    %42 = tpu.reciprocal %41 {approx = true} : vector<8x1xf32> -> vector<8x1xf32>
    %43 = vector.broadcast %42 : vector<8x1xf32> to vector<8x4xf32>
    %44 = arith.mulf %39, %43 : vector<8x4xf32>
    %cst_25 = arith.constant dense<0.000000e+00> : vector<8x32xf32>
    %45 = tpu.matmul %44, %11, %cst_25 {dimension_numbers = #tpu.dot_dimension_numbers<[1], [0], [0], [1], [0, 0, 1, 1], [], []>} : vector<8x4xf32>, vector<4x32xf32>, vector<8x32xf32> -> vector<8x32xf32>
    %46 = arith.mulf %45, %8 : vector<8x32xf32>
    %cst_26 = arith.constant dense<0.000000e+00> : vector<8x8xf32>
    %47 = tpu.matmul %46, %12, %cst_26 {dimension_numbers = #tpu.dot_dimension_numbers<[1], [0], [0], [1], [0, 0, 1, 1], [], []>} : vector<8x32xf32>, vector<32x8xf32>, vector<8x8xf32> -> vector<8x8xf32>
    %c0_27 = arith.constant 0 : index
    %c8 = arith.constant 8 : index
    %48 = vector.load %arg9[%c0_27, %c8] : memref<8x32xf32, #tpu.memory_space<vmem>>, vector<8x8xf32>
    tpu.vector_store %arg9[%c0_27, %c8], %47 {strides = array<i32>} : memref<8x32xf32, #tpu.memory_space<vmem>>, vector<8x8xf32>,
    %49 = vector.extract_strided_slice %6 {offsets = [0, 16], sizes = [8, 8], strides = [1, 1]} : vector<8x32xf32> to vector<8x8xf32>
    %cst_28 = arith.constant dense<0.000000e+00> : vector<8x32xf32>
    %50 = tpu.matmul %49, %9, %cst_28 {dimension_numbers = #tpu.dot_dimension_numbers<[1], [0], [0], [1], [0, 0, 1, 1], [], []>} : vector<8x8xf32>, vector<8x32xf32>, vector<8x32xf32> -> vector<8x32xf32>
    %51 = arith.mulf %50, %7 : vector<8x32xf32>
    %cst_29 = arith.constant dense<0.000000e+00> : vector<8x4xf32>
    %52 = tpu.matmul %51, %10, %cst_29 {dimension_numbers = #tpu.dot_dimension_numbers<[1], [0], [0], [1], [0, 0, 1, 1], [], []>} : vector<8x32xf32>, vector<32x4xf32>, vector<8x4xf32> -> vector<8x4xf32>
    %cst_30 = arith.constant dense<0xFF800000> : vector<8xf32>
    %53 = vector.multi_reduction <maximumf>, %52, %cst_30 [1] : vector<8x4xf32> to vector<8xf32>
    %54 = vector.shape_cast %53 : vector<8xf32> to vector<8x1xf32>
    %55 = vector.broadcast %54 : vector<8x1xf32> to vector<8x4xf32>
    %56 = arith.subf %52, %55 : vector<8x4xf32>
    %57 = math.exp %56 : vector<8x4xf32>
    %cst_31 = arith.constant dense<0.000000e+00> : vector<8xf32>
    %58 = vector.multi_reduction <add>, %57, %cst_31 [1] : vector<8x4xf32> to vector<8xf32>
    %59 = vector.shape_cast %58 : vector<8xf32> to vector<8x1xf32>
    %60 = tpu.reciprocal %59 {approx = true} : vector<8x1xf32> -> vector<8x1xf32>
    %61 = vector.broadcast %60 : vector<8x1xf32> to vector<8x4xf32>
    %62 = arith.mulf %57, %61 : vector<8x4xf32>
    %cst_32 = arith.constant dense<0.000000e+00> : vector<8x32xf32>
    %63 = tpu.matmul %62, %11, %cst_32 {dimension_numbers = #tpu.dot_dimension_numbers<[1], [0], [0], [1], [0, 0, 1, 1], [], []>} : vector<8x4xf32>, vector<4x32xf32>, vector<8x32xf32> -> vector<8x32xf32>
    %64 = arith.mulf %63, %8 : vector<8x32xf32>
    %cst_33 = arith.constant dense<0.000000e+00> : vector<8x8xf32>
    %65 = tpu.matmul %64, %12, %cst_33 {dimension_numbers = #tpu.dot_dimension_numbers<[1], [0], [0], [1], [0, 0, 1, 1], [], []>} : vector<8x32xf32>, vector<32x8xf32>, vector<8x8xf32> -> vector<8x8xf32>
    %c0_34 = arith.constant 0 : index
    %c16 = arith.constant 16 : index
    %66 = vector.load %arg9[%c0_34, %c16] : memref<8x32xf32, #tpu.memory_space<vmem>>, vector<8x8xf32>
    tpu.vector_store %arg9[%c0_34, %c16], %65 {strides = array<i32>} : memref<8x32xf32, #tpu.memory_space<vmem>>, vector<8x8xf32>,
    %67 = vector.extract_strided_slice %6 {offsets = [0, 24], sizes = [8, 8], strides = [1, 1]} : vector<8x32xf32> to vector<8x8xf32>
    %cst_35 = arith.constant dense<0.000000e+00> : vector<8x32xf32>
    %68 = tpu.matmul %67, %9, %cst_35 {dimension_numbers = #tpu.dot_dimension_numbers<[1], [0], [0], [1], [0, 0, 1, 1], [], []>} : vector<8x8xf32>, vector<8x32xf32>, vector<8x32xf32> -> vector<8x32xf32>
    %69 = arith.mulf %68, %7 : vector<8x32xf32>
    %cst_36 = arith.constant dense<0.000000e+00> : vector<8x4xf32>
    %70 = tpu.matmul %69, %10, %cst_36 {dimension_numbers = #tpu.dot_dimension_numbers<[1], [0], [0], [1], [0, 0, 1, 1], [], []>} : vector<8x32xf32>, vector<32x4xf32>, vector<8x4xf32> -> vector<8x4xf32>
    %cst_37 = arith.constant dense<0xFF800000> : vector<8xf32>
    %71 = vector.multi_reduction <maximumf>, %70, %cst_37 [1] : vector<8x4xf32> to vector<8xf32>
    %72 = vector.shape_cast %71 : vector<8xf32> to vector<8x1xf32>
    %73 = vector.broadcast %72 : vector<8x1xf32> to vector<8x4xf32>
    %74 = arith.subf %70, %73 : vector<8x4xf32>
    %75 = math.exp %74 : vector<8x4xf32>
    %cst_38 = arith.constant dense<0.000000e+00> : vector<8xf32>
    %76 = vector.multi_reduction <add>, %75, %cst_38 [1] : vector<8x4xf32> to vector<8xf32>
    %77 = vector.shape_cast %76 : vector<8xf32> to vector<8x1xf32>
    %78 = tpu.reciprocal %77 {approx = true} : vector<8x1xf32> -> vector<8x1xf32>
    %79 = vector.broadcast %78 : vector<8x1xf32> to vector<8x4xf32>
    %80 = arith.mulf %75, %79 : vector<8x4xf32>
    %cst_39 = arith.constant dense<0.000000e+00> : vector<8x32xf32>
    %81 = tpu.matmul %80, %11, %cst_39 {dimension_numbers = #tpu.dot_dimension_numbers<[1], [0], [0], [1], [0, 0, 1, 1], [], []>} : vector<8x4xf32>, vector<4x32xf32>, vector<8x32xf32> -> vector<8x32xf32>
    %82 = arith.mulf %81, %8 : vector<8x32xf32>
    %cst_40 = arith.constant dense<0.000000e+00> : vector<8x8xf32>
    %83 = tpu.matmul %82, %12, %cst_40 {dimension_numbers = #tpu.dot_dimension_numbers<[1], [0], [0], [1], [0, 0, 1, 1], [], []>} : vector<8x32xf32>, vector<32x8xf32>, vector<8x8xf32> -> vector<8x8xf32>
    %c0_41 = arith.constant 0 : index
    %c24 = arith.constant 24 : index
    %84 = vector.load %arg9[%c0_41, %c24] : memref<8x32xf32, #tpu.memory_space<vmem>>, vector<8x8xf32>
    tpu.vector_store %arg9[%c0_41, %c24], %83 {strides = array<i32>} : memref<8x32xf32, #tpu.memory_space<vmem>>, vector<8x8xf32>,
    %c0_42 = arith.constant 0 : index
    %c0_43 = arith.constant 0 : index
    %85 = vector.load %arg9[%c0_42, %c0_43] : memref<8x32xf32, #tpu.memory_space<vmem>>, vector<8x32xf32>
    %c0_44 = arith.constant 0 : index
    %c0_45 = arith.constant 0 : index
    %86 = vector.load %arg8[%c0_44, %c0_45] : memref<8x32xf32, #tpu.memory_space<vmem>>, vector<8x32xf32>
    tpu.vector_store %arg8[%c0_44, %c0_45], %85 {strides = array<i32>} : memref<8x32xf32, #tpu.memory_space<vmem>>, vector<8x32xf32>,
    return
  }
  func.func @transform_0(%arg0: i32) -> (i32, i32) {
    %c0_i32 = arith.constant 0 : i32
    %c0_i32_0 = arith.constant 0 : i32
    return %arg0, %c0_i32 : i32, i32
  }
  func.func @transform_1(%arg0: i32) -> (i32, i32) {
    %c0_i32 = arith.constant 0 : i32
    %c0_i32_0 = arith.constant 0 : i32
    %c0_i32_1 = arith.constant 0 : i32
    return %c0_i32, %c0_i32_0 : i32, i32
  }
  func.func @transform_2(%arg0: i32) -> (i32, i32) {
    %c0_i32 = arith.constant 0 : i32
    %c0_i32_0 = arith.constant 0 : i32
    %c0_i32_1 = arith.constant 0 : i32
    return %c0_i32, %c0_i32_0 : i32, i32
  }
  func.func @transform_3(%arg0: i32) -> (i32, i32) {
    %c0_i32 = arith.constant 0 : i32
    %c0_i32_0 = arith.constant 0 : i32
    %c0_i32_1 = arith.constant 0 : i32
    return %c0_i32, %c0_i32_0 : i32, i32
  }
  func.func @transform_4(%arg0: i32) -> (i32, i32) {
    %c0_i32 = arith.constant 0 : i32
    %c0_i32_0 = arith.constant 0 : i32
    %c0_i32_1 = arith.constant 0 : i32
    return %c0_i32, %c0_i32_0 : i32, i32
  }
  func.func @transform_5(%arg0: i32) -> (i32, i32) {
    %c0_i32 = arith.constant 0 : i32
    %c0_i32_0 = arith.constant 0 : i32
    %c0_i32_1 = arith.constant 0 : i32
    return %c0_i32, %c0_i32_0 : i32, i32
  }
  func.func @transform_6(%arg0: i32) -> (i32, i32) {
    %c0_i32 = arith.constant 0 : i32
    %c0_i32_0 = arith.constant 0 : i32
    %c0_i32_1 = arith.constant 0 : i32
    return %c0_i32, %c0_i32_0 : i32, i32
  }
  func.func @transform_7(%arg0: i32) -> (i32, i32) {
    %c0_i32 = arith.constant 0 : i32
    %c0_i32_0 = arith.constant 0 : i32
    return %arg0, %c0_i32 : i32, i32
  }
}

</mosaic_0001>

<llo_original>
// kernel: tpu_custom_call.1
$region0: #{tpu_custom_call.1}
  #allocation0 [shape = 'u32[]', space=smem, size = 0x4, offset = 0x4, fixed_abs, tag = 'smem constant byte address 0x4 - core index']
  #allocation1 [shape = 'u32[144,128]{1,0:T(1,128)}', space=vmem, size = 0x12000, scoped, tag = 'internal scratch']
  #allocation2 [shape = 'f32[8,32]{1,0:T(8,128)}', space=vmem, size = 0x1000, scoped, tag = 'scratch operand']
  %s0 = inlined_call_operand.vmem [shape: f32[8,32], index: 0, kind: input, shape index: {}]
  %s1 = inlined_call_operand.vmem [shape: f32[32,96], index: 1, kind: input, shape index: {}]
  %s2 = inlined_call_operand.vmem [shape: f32[1,96], index: 2, kind: input, shape index: {}]
  %s3 = inlined_call_operand.vmem [shape: f32[8,32], index: 3, kind: input, shape index: {}]
  %s4 = inlined_call_operand.vmem [shape: f32[32,4], index: 4, kind: input, shape index: {}]
  %s5 = inlined_call_operand.vmem [shape: f32[4,32], index: 5, kind: input, shape index: {}]
  %s6 = inlined_call_operand.vmem [shape: f32[32,8], index: 6, kind: input, shape index: {}]
  %s7 = inlined_call_operand.hbm [shape: f32[8,32], index: 7, kind: output, shape index: {}]
  %s8 = sld [smem:[#allocation0]]
  $region38: #{tpu_custom_call.1} parent=0
    _
  %s10 = ssub.s32 1, %s8
  %s11 = scalar_select 0, %s10, %s8
  $region1: #{tpu_custom_call.1} parent=0
    #allocation3 [shape = 'u8[4096]{0}', space=vmem, size = 0x1000, scoped, tag = 'output window, operand 0, single buffered']
    #allocation4 [shape = 's32[1]{0}', space=sflag, size = 0x4, scoped, tag = 'scoped memory for tpu_custom_call.1']
    %12 = vsyncpa [#allocation4], 0
    // Predicated region
    $region2: #{tpu_custom_call.1} parent=1 // pred_check
      _
    $region3: #{tpu_custom_call.1} parent=1 // pred_check_branch
      %14 = sbr.rel (0) target = $region5
    $region4: #{tpu_custom_call.1} parent=1 // pred_region
      _
    $region5: #{tpu_custom_call.1} parent=1 // pred_fallthru
      _
    // Predicated region
    $region6: #{tpu_custom_call.1} parent=1 // pred_check
      _
    $region7: #{tpu_custom_call.1} parent=1 // pred_check_branch
      %16 = sbr.rel (0) target = $region9
    $region8: #{tpu_custom_call.1} parent=1 // pred_region
      _
    $region9: #{tpu_custom_call.1} parent=1 // pred_fallthru
      _
    // Predicated region
    $region10: #{tpu_custom_call.1} parent=1 // pred_check
      _
    $region11: #{tpu_custom_call.1} parent=1 // pred_check_branch
      %18 = sbr.rel (0) target = $region13
    $region12: #{tpu_custom_call.1} parent=1 // pred_region
      _
    $region13: #{tpu_custom_call.1} parent=1 // pred_fallthru
      _
    // Predicated region
    $region14: #{tpu_custom_call.1} parent=1 // pred_check
      _
    $region15: #{tpu_custom_call.1} parent=1 // pred_check_branch
      %20 = sbr.rel (0) target = $region17
    $region16: #{tpu_custom_call.1} parent=1 // pred_region
      _
    $region17: #{tpu_custom_call.1} parent=1 // pred_fallthru
      _
    // Predicated region
    $region18: #{tpu_custom_call.1} parent=1 // pred_check
      _
    $region19: #{tpu_custom_call.1} parent=1 // pred_check_branch
      %22 = sbr.rel (0) target = $region21
    $region20: #{tpu_custom_call.1} parent=1 // pred_region
      _
    $region21: #{tpu_custom_call.1} parent=1 // pred_fallthru
      _
    // Predicated region
    $region22: #{tpu_custom_call.1} parent=1 // pred_check
      _
    $region23: #{tpu_custom_call.1} parent=1 // pred_check_branch
      %24 = sbr.rel (0) target = $region25
    $region24: #{tpu_custom_call.1} parent=1 // pred_region
      _
    $region25: #{tpu_custom_call.1} parent=1 // pred_fallthru
      _
    // Predicated region
    $region26: #{tpu_custom_call.1} parent=1 // pred_check
      _
    $region27: #{tpu_custom_call.1} parent=1 // pred_check_branch
      %26 = sbr.rel (0) target = $region29
    $region28: #{tpu_custom_call.1} parent=1 // pred_region
      _
    $region29: #{tpu_custom_call.1} parent=1 // pred_fallthru
      _
    %v27 = vld [vmem:[%s0] sm:$0xff]
    %v28 = vld [vmem:[%s1] sm:$0xff]
    %v29 = vld [vmem:[%s1 + $0x8] sm:$0xff]
    %v30 = vld [vmem:[%s1 + $0x10] sm:$0xff]
    %v31 = vld [vmem:[%s1 + $0x18] sm:$0xff]
    %v32 = vld [vmem:[%s2] sm:$0x1]
    %v34 = vlaneseq
    %v35 = vshrl.u32 %v34, 7
    %v36 = vsub.s32 0, %v35
    %v37 = vrot.slane %v32, %v36
    %vm39 = vcmask 261120
    %v41 = vsel %vm39, %v27, 0
    %43 = vmatprep.subr.mxu0 0.0
    %44 = vmatpush1.msra.mxu0 %v28
    %45 = vmatprep.subr.mxu0 0.0
    %46 = vmatpush1.msra.mxu0 %v29
    %47 = vmatprep.subr.mxu0 0.0
    %48 = vmatpush1.msra.mxu0 %v30
    %49 = vmatprep.subr.mxu0 0.0
    %50 = vmatpush1.msra.mxu0 %v31
    %51 = vmatprep.subr.mxu0 0.0
    %52 = vmatpush1.msra.mxu0 0.0
    %53 = vmatprep.subr.mxu0 0.0
    %54 = vmatpush1.msra.mxu0 0.0
    %55 = vmatprep.subr.mxu0 0.0
    %56 = vmatpush1.msra.mxu0 0.0
    %57 = vmatprep.subr.mxu0 0.0
    %58 = vmatpush1.msra.mxu0 0.0
    %59 = vmatprep.subr.mxu0 0.0
    %60 = vmatpush1.msra.mxu0 0.0
    %61 = vmatprep.subr.mxu0 0.0
    %62 = vmatpush1.msra.mxu0 0.0
    %63 = vmatprep.subr.mxu0 0.0
    %64 = vmatpush1.msra.mxu0 0.0
    %65 = vmatprep.subr.mxu0 0.0
    %66 = vmatpush1.msra.mxu0 0.0
    %67 = vmatprep.subr.mxu0 0.0
    %68 = vmatpush1.msra.mxu0 0.0
    %69 = vmatprep.subr.mxu0 0.0
    %70 = vmatpush1.msra.mxu0 0.0
    %71 = vmatprep.subr.mxu0 0.0
    %72 = vmatpush1.msra.mxu0 0.0
    %73 = vmatprep.subr.mxu0 0.0
    %74 = vmatpush1.msra.mxu0 0.0
    %75 = vmatprep.subr.mxu0 0.0
    %76 = vmatpush1.msra.mxu0 0.0
    %77 = vmatprep.subr.mxu0 0.0
    %78 = vmatpush1.msra.mxu0 0.0
    %79 = vmatprep.subr.mxu0 0.0
    %80 = vmatpush1.msra.mxu0 0.0
    %81 = vmatprep.subr.mxu0 0.0
    %82 = vmatpush1.msra.mxu0 0.0
    %83 = vmatprep.subr.mxu0 0.0
    %84 = vmatpush1.msra.mxu0 0.0
    %85 = vmatprep.subr.mxu0 0.0
    %86 = vmatpush1.msra.mxu0 0.0
    %87 = vmatprep.subr.mxu0 0.0
    %88 = vmatpush1.msra.mxu0 0.0
    %89 = vmatprep.subr.mxu0 0.0
    %90 = vmatpush1.msra.mxu0 0.0
    %91 = vmatprep.subr.mxu0 0.0
    %92 = vmatpush1.msra.mxu0 0.0
    %93 = vmatprep.subr.mxu0 0.0
    %94 = vmatpush1.msra.mxu0 0.0
    %95 = vmatprep.subr.mxu0 0.0
    %96 = vmatpush1.msra.mxu0 0.0
    %97 = vmatprep.subr.mxu0 0.0
    %98 = vmatpush1.msra.mxu0 0.0
    %99 = vmatprep.subr.mxu0 0.0
    %100 = vmatpush1.msra.mxu0 0.0
    %101 = vmatprep.subr.mxu0 0.0
    %102 = vmatpush1.msra.mxu0 0.0
    %103 = vmatprep.subr.mxu0 0.0
    %104 = vmatpush1.msra.mxu0 0.0
    %105 = vmatprep.subr.mxu0 0.0
    %106 = vmatpush1.msra.mxu0 0.0
    %107 = vmatprep.mubr.f32.mxu0 0.0
    %108 = vmatmul.mubr.f32.gmra.mrb[0].mxu0 %v41
    %v109 = vpop.f32.mrb[0].mxu0
    %v110 = vadd.f32 %v37, %v109
    %v111 = vpop.f32.mrb[0].mxu0
    %112 = vdwg.mxu0
    %v113 = vld [vmem:[%s3] sm:$0xff]
    %v114 = vld [vmem:[%s4] sm:$0xff]
    %v115 = vld [vmem:[%s4 + $0x8] sm:$0xff]
    %v116 = vld [vmem:[%s4 + $0x10] sm:$0xff]
    %v117 = vld [vmem:[%s4 + $0x18] sm:$0xff]
    %v118 = vld [vmem:[%s5] sm:$0xf]
    %v119 = vld [vmem:[%s6] sm:$0xff]
    %v120 = vld [vmem:[%s6 + $0x8] sm:$0xff]
    %v121 = vld [vmem:[%s6 + $0x10] sm:$0xff]
    %v122 = vld [vmem:[%s6 + $0x18] sm:$0xff]
    %vm123 = vcmask 64512
    %v125 = vsel %vm123, %v110, 0
    %127 = vmatprep.subr.mxu0 0.0
    %128 = vmatpush1.msra.mxu0 %v113
    %129 = vmatprep.subr.mxu0 0.0
    %130 = vmatpush1.msra.mxu0 0.0
    %131 = vmatprep.subr.mxu0 0.0
    %132 = vmatpush1.msra.mxu0 0.0
    %133 = vmatprep.subr.mxu0 0.0
    %134 = vmatpush1.msra.mxu0 0.0
    %135 = vmatprep.subr.mxu0 0.0
    %136 = vmatpush1.msra.mxu0 0.0
    %137 = vmatprep.subr.mxu0 0.0
    %138 = vmatpush1.msra.mxu0 0.0
    %139 = vmatprep.subr.mxu0 0.0
    %140 = vmatpush1.msra.mxu0 0.0
    %141 = vmatprep.subr.mxu0 0.0
    %142 = vmatpush1.msra.mxu0 0.0
    %143 = vmatprep.subr.mxu0 0.0
    %144 = vmatpush1.msra.mxu0 0.0
    %145 = vmatprep.subr.mxu0 0.0
    %146 = vmatpush1.msra.mxu0 0.0
    %147 = vmatprep.subr.mxu0 0.0
    %148 = vmatpush1.msra.mxu0 0.0
    %149 = vmatprep.subr.mxu0 0.0
    %150 = vmatpush1.msra.mxu0 0.0
    %151 = vmatprep.subr.mxu0 0.0
    %152 = vmatpush1.msra.mxu0 0.0
    %153 = vmatprep.subr.mxu0 0.0
    %154 = vmatpush1.msra.mxu0 0.0
    %155 = vmatprep.subr.mxu0 0.0
    %156 = vmatpush1.msra.mxu0 0.0
    %157 = vmatprep.subr.mxu0 0.0
    %158 = vmatpush1.msra.mxu0 0.0
    %159 = vmatprep.subr.mxu0 0.0
    %160 = vmatpush1.msra.mxu0 0.0
    %161 = vmatprep.subr.mxu0 0.0
    %162 = vmatpush1.msra.mxu0 0.0
    %163 = vmatprep.subr.mxu0 0.0
    %164 = vmatpush1.msra.mxu0 0.0
    %165 = vmatprep.subr.mxu0 0.0
    %166 = vmatpush1.msra.mxu0 0.0
    %167 = vmatprep.subr.mxu0 0.0
    %168 = vmatpush1.msra.mxu0 0.0
    %169 = vmatprep.subr.mxu0 0.0
    %170 = vmatpush1.msra.mxu0 0.0
    %171 = vmatprep.subr.mxu0 0.0
    %172 = vmatpush1.msra.mxu0 0.0
    %173 = vmatprep.subr.mxu0 0.0
    %174 = vmatpush1.msra.mxu0 0.0
    %175 = vmatprep.subr.mxu0 0.0
    %176 = vmatpush1.msra.mxu0 0.0
    %177 = vmatprep.subr.mxu0 0.0
    %178 = vmatpush1.msra.mxu0 0.0
    %179 = vmatprep.subr.mxu0 0.0
    %180 = vmatpush1.msra.mxu0 0.0
    %181 = vmatprep.subr.mxu0 0.0
    %182 = vmatpush1.msra.mxu0 0.0
    %183 = vmatprep.subr.mxu0 0.0
    %184 = vmatpush1.msra.mxu0 0.0
    %185 = vmatprep.subr.mxu0 0.0
    %186 = vmatpush1.msra.mxu0 0.0
    %187 = vmatprep.subr.mxu0 0.0
    %188 = vmatpush1.msra.mxu0 0.0
    %189 = vmatprep.subr.mxu0 0.0
    %190 = vmatpush1.msra.mxu0 0.0
    %191 = vmatprep.mubr.f32.mxu0 0.0
    %192 = vmatmul.mubr.f32.gmra.mrb[0].mxu0 %v125
    %v193 = vpop.f32.mrb[0].mxu0
    %v194 = vadd.f32 0.0, %v193
    %v195 = vpop.f32.mrb[0].mxu0
    %196 = vdwg.mxu0
    %197 = vrot.lane.b32.xlu0 %v110, 96
    %v198 = vpop.permute.xlu0 %197
    %v200 = vmul.f32 %v194, %v198
    %v202 = vsel %vm39, %v200, 0
    %204 = vmatprep.subr.mxu0 0.0
    %205 = vmatpush1.msra.mxu0 %v114
    %206 = vmatprep.subr.mxu0 0.0
    %207 = vmatpush1.msra.mxu0 %v115
    %208 = vmatprep.subr.mxu0 0.0
    %209 = vmatpush1.msra.mxu0 %v116
    %210 = vmatprep.subr.mxu0 0.0
    %211 = vmatpush1.msra.mxu0 %v117
    %212 = vmatprep.subr.mxu0 0.0
    %213 = vmatpush1.msra.mxu0 0.0
    %214 = vmatprep.subr.mxu0 0.0
    %215 = vmatpush1.msra.mxu0 0.0
    %216 = vmatprep.subr.mxu0 0.0
    %217 = vmatpush1.msra.mxu0 0.0
    %218 = vmatprep.subr.mxu0 0.0
    %219 = vmatpush1.msra.mxu0 0.0
    %220 = vmatprep.subr.mxu0 0.0
    %221 = vmatpush1.msra.mxu0 0.0
    %222 = vmatprep.subr.mxu0 0.0
    %223 = vmatpush1.msra.mxu0 0.0
    %224 = vmatprep.subr.mxu0 0.0
    %225 = vmatpush1.msra.mxu0 0.0
    %226 = vmatprep.subr.mxu0 0.0
    %227 = vmatpush1.msra.mxu0 0.0
    %228 = vmatprep.subr.mxu0 0.0
    %229 = vmatpush1.msra.mxu0 0.0
    %230 = vmatprep.subr.mxu0 0.0
    %231 = vmatpush1.msra.mxu0 0.0
    %232 = vmatprep.subr.mxu0 0.0
    %233 = vmatpush1.msra.mxu0 0.0
    %234 = vmatprep.subr.mxu0 0.0
    %235 = vmatpush1.msra.mxu0 0.0
    %236 = vmatprep.subr.mxu0 0.0
    %237 = vmatpush1.msra.mxu0 0.0
    %238 = vmatprep.subr.mxu0 0.0
    %239 = vmatpush1.msra.mxu0 0.0
    %240 = vmatprep.subr.mxu0 0.0
    %241 = vmatpush1.msra.mxu0 0.0
    %242 = vmatprep.subr.mxu0 0.0
    %243 = vmatpush1.msra.mxu0 0.0
    %244 = vmatprep.subr.mxu0 0.0
    %245 = vmatpush1.msra.mxu0 0.0
    %246 = vmatprep.subr.mxu0 0.0
    %247 = vmatpush1.msra.mxu0 0.0
    %248 = vmatprep.subr.mxu0 0.0
    %249 = vmatpush1.msra.mxu0 0.0
    %250 = vmatprep.subr.mxu0 0.0
    %251 = vmatpush1.msra.mxu0 0.0
    %252 = vmatprep.subr.mxu0 0.0
    %253 = vmatpush1.msra.mxu0 0.0
    %254 = vmatprep.subr.mxu0 0.0
    %255 = vmatpush1.msra.mxu0 0.0
    %256 = vmatprep.subr.mxu0 0.0
    %257 = vmatpush1.msra.mxu0 0.0
    %258 = vmatprep.subr.mxu0 0.0
    %259 = vmatpush1.msra.mxu0 0.0
    %260 = vmatprep.subr.mxu0 0.0
    %261 = vmatpush1.msra.mxu0 0.0
    %262 = vmatprep.subr.mxu0 0.0
    %263 = vmatpush1.msra.mxu0 0.0
    %264 = vmatprep.subr.mxu0 0.0
    %265 = vmatpush1.msra.mxu0 0.0
    %266 = vmatprep.subr.mxu0 0.0
    %267 = vmatpush1.msra.mxu0 0.0
    %268 = vmatprep.mubr.f32.mxu0 0.0
    %269 = vmatmul.mubr.f32.gmra.mrb[0].mxu0 %v202
    %v270 = vpop.f32.mrb[0].mxu0
    %v271 = vadd.f32 0.0, %v270
    %v272 = vpop.f32.mrb[0].mxu0
    %273 = vdwg.mxu0
    %vm274 = vcmask 31744
    %v275 = vsel %vm274, %v271, -inf
    %276 = vmax.xlane.f32.xlu0 %v275
    %v277 = vpop.xlane.xlu0 %276
    %v278 = vsub.f32 %v271, %v277
    %v279 = vmul.f32 %v278, 1.442695
    %v280 = vpow.pop %v279
    %v281 = vsel %vm274, %v280, 0.0
    %282 = vadd.xlane.f32.xlu0 %v281
    %v283 = vpop.xlane.xlu0 %282
    %v284 = vrcp.pop %v283
    %v285 = vmul.f32 %v280, %v284
    %v287 = vsel %vm274, %v285, 0
    %vm289 = vcmask 1043456
    %v291 = vsel %vm289, %v118, 0
    %293 = vmatprep.subr.mxu0 0.0
    %294 = vmatpush1.msra.mxu0 %v291
    %295 = vmatprep.subr.mxu0 0.0
    %296 = vmatpush1.msra.mxu0 0.0
    %297 = vmatprep.subr.mxu0 0.0
    %298 = vmatpush1.msra.mxu0 0.0
    %299 = vmatprep.subr.mxu0 0.0
    %300 = vmatpush1.msra.mxu0 0.0
    %301 = vmatprep.subr.mxu0 0.0
    %302 = vmatpush1.msra.mxu0 0.0
    %303 = vmatprep.subr.mxu0 0.0
    %304 = vmatpush1.msra.mxu0 0.0
    %305 = vmatprep.subr.mxu0 0.0
    %306 = vmatpush1.msra.mxu0 0.0
    %307 = vmatprep.subr.mxu0 0.0
    %308 = vmatpush1.msra.mxu0 0.0
    %309 = vmatprep.subr.mxu0 0.0
    %310 = vmatpush1.msra.mxu0 0.0
    %311 = vmatprep.subr.mxu0 0.0
    %312 = vmatpush1.msra.mxu0 0.0
    %313 = vmatprep.subr.mxu0 0.0
    %314 = vmatpush1.msra.mxu0 0.0
    %315 = vmatprep.subr.mxu0 0.0
    %316 = vmatpush1.msra.mxu0 0.0
    %317 = vmatprep.subr.mxu0 0.0
    %318 = vmatpush1.msra.mxu0 0.0
    %319 = vmatprep.subr.mxu0 0.0
    %320 = vmatpush1.msra.mxu0 0.0
    %321 = vmatprep.subr.mxu0 0.0
    %322 = vmatpush1.msra.mxu0 0.0
    %323 = vmatprep.subr.mxu0 0.0
    %324 = vmatpush1.msra.mxu0 0.0
    %325 = vmatprep.subr.mxu0 0.0
    %326 = vmatpush1.msra.mxu0 0.0
    %327 = vmatprep.subr.mxu0 0.0
    %328 = vmatpush1.msra.mxu0 0.0
    %329 = vmatprep.subr.mxu0 0.0
    %330 = vmatpush1.msra.mxu0 0.0
    %331 = vmatprep.subr.mxu0 0.0
    %332 = vmatpush1.msra.mxu0 0.0
    %333 = vmatprep.subr.mxu0 0.0
    %334 = vmatpush1.msra.mxu0 0.0
    %335 = vmatprep.subr.mxu0 0.0
    %336 = vmatpush1.msra.mxu0 0.0
    %337 = vmatprep.subr.mxu0 0.0
    %338 = vmatpush1.msra.mxu0 0.0
    %339 = vmatprep.subr.mxu0 0.0
    %340 = vmatpush1.msra.mxu0 0.0
    %341 = vmatprep.subr.mxu0 0.0
    %342 = vmatpush1.msra.mxu0 0.0
    %343 = vmatprep.subr.mxu0 0.0
    %344 = vmatpush1.msra.mxu0 0.0
    %345 = vmatprep.subr.mxu0 0.0
    %346 = vmatpush1.msra.mxu0 0.0
    %347 = vmatprep.subr.mxu0 0.0
    %348 = vmatpush1.msra.mxu0 0.0
    %349 = vmatprep.subr.mxu0 0.0
    %350 = vmatpush1.msra.mxu0 0.0
    %351 = vmatprep.subr.mxu0 0.0
    %352 = vmatpush1.msra.mxu0 0.0
    %353 = vmatprep.subr.mxu0 0.0
    %354 = vmatpush1.msra.mxu0 0.0
    %355 = vmatprep.subr.mxu0 0.0
    %356 = vmatpush1.msra.mxu0 0.0
    %357 = vmatprep.mubr.f32.mxu0 0.0
    %358 = vmatmul.mubr.f32.gmra.mrb[0].mxu0 %v287
    %v359 = vpop.f32.mrb[0].mxu0
    %v360 = vadd.f32 0.0, %v359
    %v361 = vpop.f32.mrb[0].mxu0
    %362 = vdwg.mxu0
    %363 = vrot.lane.b32.xlu0 %v110, 64
    %v364 = vpop.permute.xlu0 %363
    %v366 = vmul.f32 %v360, %v364
    %v368 = vsel %vm39, %v366, 0
    %370 = vmatprep.subr.mxu0 0.0
    %371 = vmatpush1.msra.mxu0 %v119
    %372 = vmatprep.subr.mxu0 0.0
    %373 = vmatpush1.msra.mxu0 %v120
    %374 = vmatprep.subr.mxu0 0.0
    %375 = vmatpush1.msra.mxu0 %v121
    %376 = vmatprep.subr.mxu0 0.0
    %377 = vmatpush1.msra.mxu0 %v122
    %378 = vmatprep.subr.mxu0 0.0
    %379 = vmatpush1.msra.mxu0 0.0
    %380 = vmatprep.subr.mxu0 0.0
    %381 = vmatpush1.msra.mxu0 0.0
    %382 = vmatprep.subr.mxu0 0.0
    %383 = vmatpush1.msra.mxu0 0.0
    %384 = vmatprep.subr.mxu0 0.0
    %385 = vmatpush1.msra.mxu0 0.0
    %386 = vmatprep.subr.mxu0 0.0
    %387 = vmatpush1.msra.mxu0 0.0
    %388 = vmatprep.subr.mxu0 0.0
    %389 = vmatpush1.msra.mxu0 0.0
    %390 = vmatprep.subr.mxu0 0.0
    %391 = vmatpush1.msra.mxu0 0.0
    %392 = vmatprep.subr.mxu0 0.0
    %393 = vmatpush1.msra.mxu0 0.0
    %394 = vmatprep.subr.mxu0 0.0
    %395 = vmatpush1.msra.mxu0 0.0
    %396 = vmatprep.subr.mxu0 0.0
    %397 = vmatpush1.msra.mxu0 0.0
    %398 = vmatprep.subr.mxu0 0.0
    %399 = vmatpush1.msra.mxu0 0.0
    %400 = vmatprep.subr.mxu0 0.0
    %401 = vmatpush1.msra.mxu0 0.0
    %402 = vmatprep.subr.mxu0 0.0
    %403 = vmatpush1.msra.mxu0 0.0
    %404 = vmatprep.subr.mxu0 0.0
    %405 = vmatpush1.msra.mxu0 0.0
    %406 = vmatprep.subr.mxu0 0.0
    %407 = vmatpush1.msra.mxu0 0.0
    %408 = vmatprep.subr.mxu0 0.0
    %409 = vmatpush1.msra.mxu0 0.0
    %410 = vmatprep.subr.mxu0 0.0
    %411 = vmatpush1.msra.mxu0 0.0
    %412 = vmatprep.subr.mxu0 0.0
    %413 = vmatpush1.msra.mxu0 0.0
    %414 = vmatprep.subr.mxu0 0.0
    %415 = vmatpush1.msra.mxu0 0.0
    %416 = vmatprep.subr.mxu0 0.0
    %417 = vmatpush1.msra.mxu0 0.0
    %418 = vmatprep.subr.mxu0 0.0
    %419 = vmatpush1.msra.mxu0 0.0
    %420 = vmatprep.subr.mxu0 0.0
    %421 = vmatpush1.msra.mxu0 0.0
    %422 = vmatprep.subr.mxu0 0.0
    %423 = vmatpush1.msra.mxu0 0.0
    %424 = vmatprep.subr.mxu0 0.0
    %425 = vmatpush1.msra.mxu0 0.0
    %426 = vmatprep.subr.mxu0 0.0
    %427 = vmatpush1.msra.mxu0 0.0
    %428 = vmatprep.subr.mxu0 0.0
    %429 = vmatpush1.msra.mxu0 0.0
    %430 = vmatprep.subr.mxu0 0.0
    %431 = vmatpush1.msra.mxu0 0.0
    %432 = vmatprep.subr.mxu0 0.0
    %433 = vmatpush1.msra.mxu0 0.0
    %434 = vmatprep.mubr.f32.mxu0 0.0
    %435 = vmatmul.mubr.f32.gmra.mrb[0].mxu0 %v368
    %v436 = vpop.f32.mrb[0].mxu0
    %v437 = vadd.f32 0.0, %v436
    %v438 = vpop.f32.mrb[0].mxu0
    %439 = vdwg.mxu0
    %440 = vst.msk [vmem:[#allocation2] sm:$0xff] %vm123, %v437
    %441 = vrot.lane.b32.xlu0 %v110, 120
    %v442 = vpop.permute.xlu0 %441
    %v443 = vsel %vm123, %v442, 0
    %445 = vmatprep.subr.mxu0 0.0
    %446 = vmatpush1.msra.mxu0 %v113
    %447 = vmatprep.subr.mxu0 0.0
    %448 = vmatpush1.msra.mxu0 0.0
    %449 = vmatprep.subr.mxu0 0.0
    %450 = vmatpush1.msra.mxu0 0.0
    %451 = vmatprep.subr.mxu0 0.0
    %452 = vmatpush1.msra.mxu0 0.0
    %453 = vmatprep.subr.mxu0 0.0
    %454 = vmatpush1.msra.mxu0 0.0
    %455 = vmatprep.subr.mxu0 0.0
    %456 = vmatpush1.msra.mxu0 0.0
    %457 = vmatprep.subr.mxu0 0.0
    %458 = vmatpush1.msra.mxu0 0.0
    %459 = vmatprep.subr.mxu0 0.0
    %460 = vmatpush1.msra.mxu0 0.0
    %461 = vmatprep.subr.mxu0 0.0
    %462 = vmatpush1.msra.mxu0 0.0
    %463 = vmatprep.subr.mxu0 0.0
    %464 = vmatpush1.msra.mxu0 0.0
    %465 = vmatprep.subr.mxu0 0.0
    %466 = vmatpush1.msra.mxu0 0.0
    %467 = vmatprep.subr.mxu0 0.0
    %468 = vmatpush1.msra.mxu0 0.0
    %469 = vmatprep.subr.mxu0 0.0
    %470 = vmatpush1.msra.mxu0 0.0
    %471 = vmatprep.subr.mxu0 0.0
    %472 = vmatpush1.msra.mxu0 0.0
    %473 = vmatprep.subr.mxu0 0.0
    %474 = vmatpush1.msra.mxu0 0.0
    %475 = vmatprep.subr.mxu0 0.0
    %476 = vmatpush1.msra.mxu0 0.0
    %477 = vmatprep.subr.mxu0 0.0
    %478 = vmatpush1.msra.mxu0 0.0
    %479 = vmatprep.subr.mxu0 0.0
    %480 = vmatpush1.msra.mxu0 0.0
    %481 = vmatprep.subr.mxu0 0.0
    %482 = vmatpush1.msra.mxu0 0.0
    %483 = vmatprep.subr.mxu0 0.0
    %484 = vmatpush1.msra.mxu0 0.0
    %485 = vmatprep.subr.mxu0 0.0
    %486 = vmatpush1.msra.mxu0 0.0
    %487 = vmatprep.subr.mxu0 0.0
    %488 = vmatpush1.msra.mxu0 0.0
    %489 = vmatprep.subr.mxu0 0.0
    %490 = vmatpush1.msra.mxu0 0.0
    %491 = vmatprep.subr.mxu0 0.0
    %492 = vmatpush1.msra.mxu0 0.0
    %493 = vmatprep.subr.mxu0 0.0
    %494 = vmatpush1.msra.mxu0 0.0
    %495 = vmatprep.subr.mxu0 0.0
    %496 = vmatpush1.msra.mxu0 0.0
    %497 = vmatprep.subr.mxu0 0.0
    %498 = vmatpush1.msra.mxu0 0.0
    %499 = vmatprep.subr.mxu0 0.0
    %500 = vmatpush1.msra.mxu0 0.0
    %501 = vmatprep.subr.mxu0 0.0
    %502 = vmatpush1.msra.mxu0 0.0
    %503 = vmatprep.subr.mxu0 0.0
    %504 = vmatpush1.msra.mxu0 0.0
    %505 = vmatprep.subr.mxu0 0.0
    %506 = vmatpush1.msra.mxu0 0.0
    %507 = vmatprep.subr.mxu0 0.0
    %508 = vmatpush1.msra.mxu0 0.0
    %509 = vmatprep.mubr.f32.mxu0 0.0
    %510 = vmatmul.mubr.f32.gmra.mrb[0].mxu0 %v443
    %v511 = vpop.f32.mrb[0].mxu0
    %v512 = vadd.f32 0.0, %v511
    %v513 = vpop.f32.mrb[0].mxu0
    %514 = vdwg.mxu0
    %v515 = vmul.f32 %v512, %v198
    %v517 = vsel %vm39, %v515, 0
    %519 = vmatprep.subr.mxu0 0.0
    %520 = vmatpush1.msra.mxu0 %v114
    %521 = vmatprep.subr.mxu0 0.0
    %522 = vmatpush1.msra.mxu0 %v115
    %523 = vmatprep.subr.mxu0 0.0
    %524 = vmatpush1.msra.mxu0 %v116
    %525 = vmatprep.subr.mxu0 0.0
    %526 = vmatpush1.msra.mxu0 %v117
    %527 = vmatprep.subr.mxu0 0.0
    %528 = vmatpush1.msra.mxu0 0.0
    %529 = vmatprep.subr.mxu0 0.0
    %530 = vmatpush1.msra.mxu0 0.0
    %531 = vmatprep.subr.mxu0 0.0
    %532 = vmatpush1.msra.mxu0 0.0
    %533 = vmatprep.subr.mxu0 0.0
    %534 = vmatpush1.msra.mxu0 0.0
    %535 = vmatprep.subr.mxu0 0.0
    %536 = vmatpush1.msra.mxu0 0.0
    %537 = vmatprep.subr.mxu0 0.0
    %538 = vmatpush1.msra.mxu0 0.0
    %539 = vmatprep.subr.mxu0 0.0
    %540 = vmatpush1.msra.mxu0 0.0
    %541 = vmatprep.subr.mxu0 0.0
    %542 = vmatpush1.msra.mxu0 0.0
    %543 = vmatprep.subr.mxu0 0.0
    %544 = vmatpush1.msra.mxu0 0.0
    %545 = vmatprep.subr.mxu0 0.0
    %546 = vmatpush1.msra.mxu0 0.0
    %547 = vmatprep.subr.mxu0 0.0
    %548 = vmatpush1.msra.mxu0 0.0
    %549 = vmatprep.subr.mxu0 0.0
    %550 = vmatpush1.msra.mxu0 0.0
    %551 = vmatprep.subr.mxu0 0.0
    %552 = vmatpush1.msra.mxu0 0.0
    %553 = vmatprep.subr.mxu0 0.0
    %554 = vmatpush1.msra.mxu0 0.0
    %555 = vmatprep.subr.mxu0 0.0
    %556 = vmatpush1.msra.mxu0 0.0
    %557 = vmatprep.subr.mxu0 0.0
    %558 = vmatpush1.msra.mxu0 0.0
    %559 = vmatprep.subr.mxu0 0.0
    %560 = vmatpush1.msra.mxu0 0.0
    %561 = vmatprep.subr.mxu0 0.0
    %562 = vmatpush1.msra.mxu0 0.0
    %563 = vmatprep.subr.mxu0 0.0
    %564 = vmatpush1.msra.mxu0 0.0
    %565 = vmatprep.subr.mxu0 0.0
    %566 = vmatpush1.msra.mxu0 0.0
    %567 = vmatprep.subr.mxu0 0.0
    %568 = vmatpush1.msra.mxu0 0.0
    %569 = vmatprep.subr.mxu0 0.0
    %570 = vmatpush1.msra.mxu0 0.0
    %571 = vmatprep.subr.mxu0 0.0
    %572 = vmatpush1.msra.mxu0 0.0
    %573 = vmatprep.subr.mxu0 0.0
    %574 = vmatpush1.msra.mxu0 0.0
    %575 = vmatprep.subr.mxu0 0.0
    %576 = vmatpush1.msra.mxu0 0.0
    %577 = vmatprep.subr.mxu0 0.0
    %578 = vmatpush1.msra.mxu0 0.0
    %579 = vmatprep.subr.mxu0 0.0
    %580 = vmatpush1.msra.mxu0 0.0
    %581 = vmatprep.subr.mxu0 0.0
    %582 = vmatpush1.msra.mxu0 0.0
    %583 = vmatprep.mubr.f32.mxu0 0.0
    %584 = vmatmul.mubr.f32.gmra.mrb[0].mxu0 %v517
    %v585 = vpop.f32.mrb[0].mxu0
    %v586 = vadd.f32 0.0, %v585
    %v587 = vpop.f32.mrb[0].mxu0
    %588 = vdwg.mxu0
    %v589 = vsel %vm274, %v586, -inf
    %590 = vmax.xlane.f32.xlu0 %v589
    %v591 = vpop.xlane.xlu0 %590
    %v592 = vsub.f32 %v586, %v591
    %v593 = vmul.f32 %v592, 1.442695
    %v594 = vpow.pop %v593
    %v595 = vsel %vm274, %v594, 0.0
    %596 = vadd.xlane.f32.xlu0 %v595
    %v597 = vpop.xlane.xlu0 %596
    %v598 = vrcp.pop %v597
    %v599 = vmul.f32 %v594, %v598
    %v601 = vsel %vm274, %v599, 0
    %603 = vmatprep.subr.mxu0 0.0
    %604 = vmatpush1.msra.mxu0 %v291
    %605 = vmatprep.subr.mxu0 0.0
    %606 = vmatpush1.msra.mxu0 0.0
    %607 = vmatprep.subr.mxu0 0.0
    %608 = vmatpush1.msra.mxu0 0.0
    %609 = vmatprep.subr.mxu0 0.0
    %610 = vmatpush1.msra.mxu0 0.0
    %611 = vmatprep.subr.mxu0 0.0
    %612 = vmatpush1.msra.mxu0 0.0
    %613 = vmatprep.subr.mxu0 0.0
    %614 = vmatpush1.msra.mxu0 0.0
    %615 = vmatprep.subr.mxu0 0.0
    %616 = vmatpush1.msra.mxu0 0.0
    %617 = vmatprep.subr.mxu0 0.0
    %618 = vmatpush1.msra.mxu0 0.0
    %619 = vmatprep.subr.mxu0 0.0
    %620 = vmatpush1.msra.mxu0 0.0
    %621 = vmatprep.subr.mxu0 0.0
    %622 = vmatpush1.msra.mxu0 0.0
    %623 = vmatprep.subr.mxu0 0.0
    %624 = vmatpush1.msra.mxu0 0.0
    %625 = vmatprep.subr.mxu0 0.0
    %626 = vmatpush1.msra.mxu0 0.0
    %627 = vmatprep.subr.mxu0 0.0
    %628 = vmatpush1.msra.mxu0 0.0
    %629 = vmatprep.subr.mxu0 0.0
    %630 = vmatpush1.msra.mxu0 0.0
    %631 = vmatprep.subr.mxu0 0.0
    %632 = vmatpush1.msra.mxu0 0.0
    %633 = vmatprep.subr.mxu0 0.0
    %634 = vmatpush1.msra.mxu0 0.0
    %635 = vmatprep.subr.mxu0 0.0
    %636 = vmatpush1.msra.mxu0 0.0
    %637 = vmatprep.subr.mxu0 0.0
    %638 = vmatpush1.msra.mxu0 0.0
    %639 = vmatprep.subr.mxu0 0.0
    %640 = vmatpush1.msra.mxu0 0.0
    %641 = vmatprep.subr.mxu0 0.0
    %642 = vmatpush1.msra.mxu0 0.0
    %643 = vmatprep.subr.mxu0 0.0
    %644 = vmatpush1.msra.mxu0 0.0
    %645 = vmatprep.subr.mxu0 0.0
    %646 = vmatpush1.msra.mxu0 0.0
    %647 = vmatprep.subr.mxu0 0.0
    %648 = vmatpush1.msra.mxu0 0.0
    %649 = vmatprep.subr.mxu0 0.0
    %650 = vmatpush1.msra.mxu0 0.0
    %651 = vmatprep.subr.mxu0 0.0
    %652 = vmatpush1.msra.mxu0 0.0
    %653 = vmatprep.subr.mxu0 0.0
    %654 = vmatpush1.msra.mxu0 0.0
    %655 = vmatprep.subr.mxu0 0.0
    %656 = vmatpush1.msra.mxu0 0.0
    %657 = vmatprep.subr.mxu0 0.0
    %658 = vmatpush1.msra.mxu0 0.0
    %659 = vmatprep.subr.mxu0 0.0
    %660 = vmatpush1.msra.mxu0 0.0
    %661 = vmatprep.subr.mxu0 0.0
    %662 = vmatpush1.msra.mxu0 0.0
    %663 = vmatprep.subr.mxu0 0.0
    %664 = vmatpush1.msra.mxu0 0.0
    %665 = vmatprep.subr.mxu0 0.0
    %666 = vmatpush1.msra.mxu0 0.0
    %667 = vmatprep.mubr.f32.mxu0 0.0
    %668 = vmatmul.mubr.f32.gmra.mrb[0].mxu0 %v601
    %v669 = vpop.f32.mrb[0].mxu0
    %v670 = vadd.f32 0.0, %v669
    %v671 = vpop.f32.mrb[0].mxu0
    %672 = vdwg.mxu0
    %v673 = vmul.f32 %v670, %v364
    %v675 = vsel %vm39, %v673, 0
    %677 = vmatprep.subr.mxu0 0.0
    %678 = vmatpush1.msra.mxu0 %v119
    %679 = vmatprep.subr.mxu0 0.0
    %680 = vmatpush1.msra.mxu0 %v120
    %681 = vmatprep.subr.mxu0 0.0
    %682 = vmatpush1.msra.mxu0 %v121
    %683 = vmatprep.subr.mxu0 0.0
    %684 = vmatpush1.msra.mxu0 %v122
    %685 = vmatprep.subr.mxu0 0.0
    %686 = vmatpush1.msra.mxu0 0.0
    %687 = vmatprep.subr.mxu0 0.0
    %688 = vmatpush1.msra.mxu0 0.0
    %689 = vmatprep.subr.mxu0 0.0
    %690 = vmatpush1.msra.mxu0 0.0
    %691 = vmatprep.subr.mxu0 0.0
    %692 = vmatpush1.msra.mxu0 0.0
    %693 = vmatprep.subr.mxu0 0.0
    %694 = vmatpush1.msra.mxu0 0.0
    %695 = vmatprep.subr.mxu0 0.0
    %696 = vmatpush1.msra.mxu0 0.0
    %697 = vmatprep.subr.mxu0 0.0
    %698 = vmatpush1.msra.mxu0 0.0
    %699 = vmatprep.subr.mxu0 0.0
    %700 = vmatpush1.msra.mxu0 0.0
    %701 = vmatprep.subr.mxu0 0.0
    %702 = vmatpush1.msra.mxu0 0.0
    %703 = vmatprep.subr.mxu0 0.0
    %704 = vmatpush1.msra.mxu0 0.0
    %705 = vmatprep.subr.mxu0 0.0
    %706 = vmatpush1.msra.mxu0 0.0
    %707 = vmatprep.subr.mxu0 0.0
    %708 = vmatpush1.msra.mxu0 0.0
    %709 = vmatprep.subr.mxu0 0.0
    %710 = vmatpush1.msra.mxu0 0.0
    %711 = vmatprep.subr.mxu0 0.0
    %712 = vmatpush1.msra.mxu0 0.0
    %713 = vmatprep.subr.mxu0 0.0
    %714 = vmatpush1.msra.mxu0 0.0
    %715 = vmatprep.subr.mxu0 0.0
    %716 = vmatpush1.msra.mxu0 0.0
    %717 = vmatprep.subr.mxu0 0.0
    %718 = vmatpush1.msra.mxu0 0.0
    %719 = vmatprep.subr.mxu0 0.0
    %720 = vmatpush1.msra.mxu0 0.0
    %721 = vmatprep.subr.mxu0 0.0
    %722 = vmatpush1.msra.mxu0 0.0
    %723 = vmatprep.subr.mxu0 0.0
    %724 = vmatpush1.msra.mxu0 0.0
    %725 = vmatprep.subr.mxu0 0.0
    %726 = vmatpush1.msra.mxu0 0.0
    %727 = vmatprep.subr.mxu0 0.0
    %728 = vmatpush1.msra.mxu0 0.0
    %729 = vmatprep.subr.mxu0 0.0
    %730 = vmatpush1.msra.mxu0 0.0
    %731 = vmatprep.subr.mxu0 0.0
    %732 = vmatpush1.msra.mxu0 0.0
    %733 = vmatprep.subr.mxu0 0.0
    %734 = vmatpush1.msra.mxu0 0.0
    %735 = vmatprep.subr.mxu0 0.0
    %736 = vmatpush1.msra.mxu0 0.0
    %737 = vmatprep.subr.mxu0 0.0
    %738 = vmatpush1.msra.mxu0 0.0
    %739 = vmatprep.subr.mxu0 0.0
    %740 = vmatpush1.msra.mxu0 0.0
    %741 = vmatprep.mubr.f32.mxu0 0.0
    %742 = vmatmul.mubr.f32.gmra.mrb[0].mxu0 %v675
    %v743 = vpop.f32.mrb[0].mxu0
    %v744 = vadd.f32 0.0, %v743
    %v745 = vpop.f32.mrb[0].mxu0
    %746 = vdwg.mxu0
    %748 = vrot.lane.b32.xlu0 %v744, 8
    %v749 = vpop.permute.xlu0 %748
    %vm751 = vcmask 130112
    %752 = vst.msk [vmem:[#allocation2] sm:$0xff] %vm751, %v749
    %753 = vrot.lane.b32.xlu0 %v110, 112
    %v754 = vpop.permute.xlu0 %753
    %v755 = vsel %vm123, %v754, 0
    %757 = vmatprep.subr.mxu0 0.0
    %758 = vmatpush1.msra.mxu0 %v113
    %759 = vmatprep.subr.mxu0 0.0
    %760 = vmatpush1.msra.mxu0 0.0
    %761 = vmatprep.subr.mxu0 0.0
    %762 = vmatpush1.msra.mxu0 0.0
    %763 = vmatprep.subr.mxu0 0.0
    %764 = vmatpush1.msra.mxu0 0.0
    %765 = vmatprep.subr.mxu0 0.0
    %766 = vmatpush1.msra.mxu0 0.0
    %767 = vmatprep.subr.mxu0 0.0
    %768 = vmatpush1.msra.mxu0 0.0
    %769 = vmatprep.subr.mxu0 0.0
    %770 = vmatpush1.msra.mxu0 0.0
    %771 = vmatprep.subr.mxu0 0.0
    %772 = vmatpush1.msra.mxu0 0.0
    %773 = vmatprep.subr.mxu0 0.0
    %774 = vmatpush1.msra.mxu0 0.0
    %775 = vmatprep.subr.mxu0 0.0
    %776 = vmatpush1.msra.mxu0 0.0
    %777 = vmatprep.subr.mxu0 0.0
    %778 = vmatpush1.msra.mxu0 0.0
    %779 = vmatprep.subr.mxu0 0.0
    %780 = vmatpush1.msra.mxu0 0.0
    %781 = vmatprep.subr.mxu0 0.0
    %782 = vmatpush1.msra.mxu0 0.0
    %783 = vmatprep.subr.mxu0 0.0
    %784 = vmatpush1.msra.mxu0 0.0
    %785 = vmatprep.subr.mxu0 0.0
    %786 = vmatpush1.msra.mxu0 0.0
    %787 = vmatprep.subr.mxu0 0.0
    %788 = vmatpush1.msra.mxu0 0.0
    %789 = vmatprep.subr.mxu0 0.0
    %790 = vmatpush1.msra.mxu0 0.0
    %791 = vmatprep.subr.mxu0 0.0
    %792 = vmatpush1.msra.mxu0 0.0
    %793 = vmatprep.subr.mxu0 0.0
    %794 = vmatpush1.msra.mxu0 0.0
    %795 = vmatprep.subr.mxu0 0.0
    %796 = vmatpush1.msra.mxu0 0.0
    %797 = vmatprep.subr.mxu0 0.0
    %798 = vmatpush1.msra.mxu0 0.0
    %799 = vmatprep.subr.mxu0 0.0
    %800 = vmatpush1.msra.mxu0 0.0
    %801 = vmatprep.subr.mxu0 0.0
    %802 = vmatpush1.msra.mxu0 0.0
    %803 = vmatprep.subr.mxu0 0.0
    %804 = vmatpush1.msra.mxu0 0.0
    %805 = vmatprep.subr.mxu0 0.0
    %806 = vmatpush1.msra.mxu0 0.0
    %807 = vmatprep.subr.mxu0 0.0
    %808 = vmatpush1.msra.mxu0 0.0
    %809 = vmatprep.subr.mxu0 0.0
    %810 = vmatpush1.msra.mxu0 0.0
    %811 = vmatprep.subr.mxu0 0.0
    %812 = vmatpush1.msra.mxu0 0.0
    %813 = vmatprep.subr.mxu0 0.0
    %814 = vmatpush1.msra.mxu0 0.0
    %815 = vmatprep.subr.mxu0 0.0
    %816 = vmatpush1.msra.mxu0 0.0
    %817 = vmatprep.subr.mxu0 0.0
    %818 = vmatpush1.msra.mxu0 0.0
    %819 = vmatprep.subr.mxu0 0.0
    %820 = vmatpush1.msra.mxu0 0.0
    %821 = vmatprep.mubr.f32.mxu0 0.0
    %822 = vmatmul.mubr.f32.gmra.mrb[0].mxu0 %v755
    %v823 = vpop.f32.mrb[0].mxu0
    %v824 = vadd.f32 0.0, %v823
    %v825 = vpop.f32.mrb[0].mxu0
    %826 = vdwg.mxu0
    %v827 = vmul.f32 %v824, %v198
    %v829 = vsel %vm39, %v827, 0
    %831 = vmatprep.subr.mxu0 0.0
    %832 = vmatpush1.msra.mxu0 %v114
    %833 = vmatprep.subr.mxu0 0.0
    %834 = vmatpush1.msra.mxu0 %v115
    %835 = vmatprep.subr.mxu0 0.0
    %836 = vmatpush1.msra.mxu0 %v116
    %837 = vmatprep.subr.mxu0 0.0
    %838 = vmatpush1.msra.mxu0 %v117
    %839 = vmatprep.subr.mxu0 0.0
    %840 = vmatpush1.msra.mxu0 0.0
    %841 = vmatprep.subr.mxu0 0.0
    %842 = vmatpush1.msra.mxu0 0.0
    %843 = vmatprep.subr.mxu0 0.0
    %844 = vmatpush1.msra.mxu0 0.0
    %845 = vmatprep.subr.mxu0 0.0
    %846 = vmatpush1.msra.mxu0 0.0
    %847 = vmatprep.subr.mxu0 0.0
    %848 = vmatpush1.msra.mxu0 0.0
    %849 = vmatprep.subr.mxu0 0.0
    %850 = vmatpush1.msra.mxu0 0.0
    %851 = vmatprep.subr.mxu0 0.0
    %852 = vmatpush1.msra.mxu0 0.0
    %853 = vmatprep.subr.mxu0 0.0
    %854 = vmatpush1.msra.mxu0 0.0
    %855 = vmatprep.subr.mxu0 0.0
    %856 = vmatpush1.msra.mxu0 0.0
    %857 = vmatprep.subr.mxu0 0.0
    %858 = vmatpush1.msra.mxu0 0.0
    %859 = vmatprep.subr.mxu0 0.0
    %860 = vmatpush1.msra.mxu0 0.0
    %861 = vmatprep.subr.mxu0 0.0
    %862 = vmatpush1.msra.mxu0 0.0
    %863 = vmatprep.subr.mxu0 0.0
    %864 = vmatpush1.msra.mxu0 0.0
    %865 = vmatprep.subr.mxu0 0.0
    %866 = vmatpush1.msra.mxu0 0.0
    %867 = vmatprep.subr.mxu0 0.0
    %868 = vmatpush1.msra.mxu0 0.0
    %869 = vmatprep.subr.mxu0 0.0
    %870 = vmatpush1.msra.mxu0 0.0
    %871 = vmatprep.subr.mxu0 0.0
    %872 = vmatpush1.msra.mxu0 0.0
    %873 = vmatprep.subr.mxu0 0.0
    %874 = vmatpush1.msra.mxu0 0.0
    %875 = vmatprep.subr.mxu0 0.0
    %876 = vmatpush1.msra.mxu0 0.0
    %877 = vmatprep.subr.mxu0 0.0
    %878 = vmatpush1.msra.mxu0 0.0
    %879 = vmatprep.subr.mxu0 0.0
    %880 = vmatpush1.msra.mxu0 0.0
    %881 = vmatprep.subr.mxu0 0.0
    %882 = vmatpush1.msra.mxu0 0.0
    %883 = vmatprep.subr.mxu0 0.0
    %884 = vmatpush1.msra.mxu0 0.0
    %885 = vmatprep.subr.mxu0 0.0
    %886 = vmatpush1.msra.mxu0 0.0
    %887 = vmatprep.subr.mxu0 0.0
    %888 = vmatpush1.msra.mxu0 0.0
    %889 = vmatprep.subr.mxu0 0.0
    %890 = vmatpush1.msra.mxu0 0.0
    %891 = vmatprep.subr.mxu0 0.0
    %892 = vmatpush1.msra.mxu0 0.0
    %893 = vmatprep.subr.mxu0 0.0
    %894 = vmatpush1.msra.mxu0 0.0
    %895 = vmatprep.mubr.f32.mxu0 0.0
    %896 = vmatmul.mubr.f32.gmra.mrb[0].mxu0 %v829
    %v897 = vpop.f32.mrb[0].mxu0
    %v898 = vadd.f32 0.0, %v897
    %v899 = vpop.f32.mrb[0].mxu0
    %900 = vdwg.mxu0
    %v901 = vsel %vm274, %v898, -inf
    %902 = vmax.xlane.f32.xlu0 %v901
    %v903 = vpop.xlane.xlu0 %902
    %v904 = vsub.f32 %v898, %v903
    %v905 = vmul.f32 %v904, 1.442695
    %v906 = vpow.pop %v905
    %v907 = vsel %vm274, %v906, 0.0
    %908 = vadd.xlane.f32.xlu0 %v907
    %v909 = vpop.xlane.xlu0 %908
    %v910 = vrcp.pop %v909
    %v911 = vmul.f32 %v906, %v910
    %v913 = vsel %vm274, %v911, 0
    %915 = vmatprep.subr.mxu0 0.0
    %916 = vmatpush1.msra.mxu0 %v291
    %917 = vmatprep.subr.mxu0 0.0
    %918 = vmatpush1.msra.mxu0 0.0
    %919 = vmatprep.subr.mxu0 0.0
    %920 = vmatpush1.msra.mxu0 0.0
    %921 = vmatprep.subr.mxu0 0.0
    %922 = vmatpush1.msra.mxu0 0.0
    %923 = vmatprep.subr.mxu0 0.0
    %924 = vmatpush1.msra.mxu0 0.0
    %925 = vmatprep.subr.mxu0 0.0
    %926 = vmatpush1.msra.mxu0 0.0
    %927 = vmatprep.subr.mxu0 0.0
    %928 = vmatpush1.msra.mxu0 0.0
    %929 = vmatprep.subr.mxu0 0.0
    %930 = vmatpush1.msra.mxu0 0.0
    %931 = vmatprep.subr.mxu0 0.0
    %932 = vmatpush1.msra.mxu0 0.0
    %933 = vmatprep.subr.mxu0 0.0
    %934 = vmatpush1.msra.mxu0 0.0
    %935 = vmatprep.subr.mxu0 0.0
    %936 = vmatpush1.msra.mxu0 0.0
    %937 = vmatprep.subr.mxu0 0.0
    %938 = vmatpush1.msra.mxu0 0.0
    %939 = vmatprep.subr.mxu0 0.0
    %940 = vmatpush1.msra.mxu0 0.0
    %941 = vmatprep.subr.mxu0 0.0
    %942 = vmatpush1.msra.mxu0 0.0
    %943 = vmatprep.subr.mxu0 0.0
    %944 = vmatpush1.msra.mxu0 0.0
    %945 = vmatprep.subr.mxu0 0.0
    %946 = vmatpush1.msra.mxu0 0.0
    %947 = vmatprep.subr.mxu0 0.0
    %948 = vmatpush1.msra.mxu0 0.0
    %949 = vmatprep.subr.mxu0 0.0
    %950 = vmatpush1.msra.mxu0 0.0
    %951 = vmatprep.subr.mxu0 0.0
    %952 = vmatpush1.msra.mxu0 0.0
    %953 = vmatprep.subr.mxu0 0.0
    %954 = vmatpush1.msra.mxu0 0.0
    %955 = vmatprep.subr.mxu0 0.0
    %956 = vmatpush1.msra.mxu0 0.0
    %957 = vmatprep.subr.mxu0 0.0
    %958 = vmatpush1.msra.mxu0 0.0
    %959 = vmatprep.subr.mxu0 0.0
    %960 = vmatpush1.msra.mxu0 0.0
    %961 = vmatprep.subr.mxu0 0.0
    %962 = vmatpush1.msra.mxu0 0.0
    %963 = vmatprep.subr.mxu0 0.0
    %964 = vmatpush1.msra.mxu0 0.0
    %965 = vmatprep.subr.mxu0 0.0
    %966 = vmatpush1.msra.mxu0 0.0
    %967 = vmatprep.subr.mxu0 0.0
    %968 = vmatpush1.msra.mxu0 0.0
    %969 = vmatprep.subr.mxu0 0.0
    %970 = vmatpush1.msra.mxu0 0.0
    %971 = vmatprep.subr.mxu0 0.0
    %972 = vmatpush1.msra.mxu0 0.0
    %973 = vmatprep.subr.mxu0 0.0
    %974 = vmatpush1.msra.mxu0 0.0
    %975 = vmatprep.subr.mxu0 0.0
    %976 = vmatpush1.msra.mxu0 0.0
    %977 = vmatprep.subr.mxu0 0.0
    %978 = vmatpush1.msra.mxu0 0.0
    %979 = vmatprep.mubr.f32.mxu0 0.0
    %980 = vmatmul.mubr.f32.gmra.mrb[0].mxu0 %v913
    %v981 = vpop.f32.mrb[0].mxu0
    %v982 = vadd.f32 0.0, %v981
    %v983 = vpop.f32.mrb[0].mxu0
    %984 = vdwg.mxu0
    %v985 = vmul.f32 %v982, %v364
    %v987 = vsel %vm39, %v985, 0
    %989 = vmatprep.subr.mxu0 0.0
    %990 = vmatpush1.msra.mxu0 %v119
    %991 = vmatprep.subr.mxu0 0.0
    %992 = vmatpush1.msra.mxu0 %v120
    %993 = vmatprep.subr.mxu0 0.0
    %994 = vmatpush1.msra.mxu0 %v121
    %995 = vmatprep.subr.mxu0 0.0
    %996 = vmatpush1.msra.mxu0 %v122
    %997 = vmatprep.subr.mxu0 0.0
    %998 = vmatpush1.msra.mxu0 0.0
    %999 = vmatprep.subr.mxu0 0.0
    %1000 = vmatpush1.msra.mxu0 0.0
    %1001 = vmatprep.subr.mxu0 0.0
    %1002 = vmatpush1.msra.mxu0 0.0
    %1003 = vmatprep.subr.mxu0 0.0
    %1004 = vmatpush1.msra.mxu0 0.0
    %1005 = vmatprep.subr.mxu0 0.0
    %1006 = vmatpush1.msra.mxu0 0.0
    %1007 = vmatprep.subr.mxu0 0.0
    %1008 = vmatpush1.msra.mxu0 0.0
    %1009 = vmatprep.subr.mxu0 0.0
    %1010 = vmatpush1.msra.mxu0 0.0
    %1011 = vmatprep.subr.mxu0 0.0
    %1012 = vmatpush1.msra.mxu0 0.0
    %1013 = vmatprep.subr.mxu0 0.0
    %1014 = vmatpush1.msra.mxu0 0.0
    %1015 = vmatprep.subr.mxu0 0.0
    %1016 = vmatpush1.msra.mxu0 0.0
    %1017 = vmatprep.subr.mxu0 0.0
    %1018 = vmatpush1.msra.mxu0 0.0
    %1019 = vmatprep.subr.mxu0 0.0
    %1020 = vmatpush1.msra.mxu0 0.0
    %1021 = vmatprep.subr.mxu0 0.0
    %1022 = vmatpush1.msra.mxu0 0.0
    %1023 = vmatprep.subr.mxu0 0.0
    %1024 = vmatpush1.msra.mxu0 0.0
    %1025 = vmatprep.subr.mxu0 0.0
    %1026 = vmatpush1.msra.mxu0 0.0
    %1027 = vmatprep.subr.mxu0 0.0
    %1028 = vmatpush1.msra.mxu0 0.0
    %1029 = vmatprep.subr.mxu0 0.0
    %1030 = vmatpush1.msra.mxu0 0.0
    %1031 = vmatprep.subr.mxu0 0.0
    %1032 = vmatpush1.msra.mxu0 0.0
    %1033 = vmatprep.subr.mxu0 0.0
    %1034 = vmatpush1.msra.mxu0 0.0
    %1035 = vmatprep.subr.mxu0 0.0
    %1036 = vmatpush1.msra.mxu0 0.0
    %1037 = vmatprep.subr.mxu0 0.0
    %1038 = vmatpush1.msra.mxu0 0.0
    %1039 = vmatprep.subr.mxu0 0.0
    %1040 = vmatpush1.msra.mxu0 0.0
    %1041 = vmatprep.subr.mxu0 0.0
    %1042 = vmatpush1.msra.mxu0 0.0
    %1043 = vmatprep.subr.mxu0 0.0
    %1044 = vmatpush1.msra.mxu0 0.0
    %1045 = vmatprep.subr.mxu0 0.0
    %1046 = vmatpush1.msra.mxu0 0.0
    %1047 = vmatprep.subr.mxu0 0.0
    %1048 = vmatpush1.msra.mxu0 0.0
    %1049 = vmatprep.subr.mxu0 0.0
    %1050 = vmatpush1.msra.mxu0 0.0
    %1051 = vmatprep.subr.mxu0 0.0
    %1052 = vmatpush1.msra.mxu0 0.0
    %1053 = vmatprep.mubr.f32.mxu0 0.0
    %1054 = vmatmul.mubr.f32.gmra.mrb[0].mxu0 %v987
    %v1055 = vpop.f32.mrb[0].mxu0
    %v1056 = vadd.f32 0.0, %v1055
    %v1057 = vpop.f32.mrb[0].mxu0
    %1058 = vdwg.mxu0
    %1060 = vrot.lane.b32.xlu0 %v1056, 16
    %v1061 = vpop.permute.xlu0 %1060
    %vm1063 = vcmask 195712
    %1064 = vst.msk [vmem:[#allocation2] sm:$0xff] %vm1063, %v1061
    %1065 = vrot.lane.b32.xlu0 %v110, 104
    %v1066 = vpop.permute.xlu0 %1065
    %v1067 = vsel %vm123, %v1066, 0
    %1069 = vmatprep.subr.mxu0 0.0
    %1070 = vmatpush1.msra.mxu0 %v113
    %1071 = vmatprep.subr.mxu0 0.0
    %1072 = vmatpush1.msra.mxu0 0.0
    %1073 = vmatprep.subr.mxu0 0.0
    %1074 = vmatpush1.msra.mxu0 0.0
    %1075 = vmatprep.subr.mxu0 0.0
    %1076 = vmatpush1.msra.mxu0 0.0
    %1077 = vmatprep.subr.mxu0 0.0
    %1078 = vmatpush1.msra.mxu0 0.0
    %1079 = vmatprep.subr.mxu0 0.0
    %1080 = vmatpush1.msra.mxu0 0.0
    %1081 = vmatprep.subr.mxu0 0.0
    %1082 = vmatpush1.msra.mxu0 0.0
    %1083 = vmatprep.subr.mxu0 0.0
    %1084 = vmatpush1.msra.mxu0 0.0
    %1085 = vmatprep.subr.mxu0 0.0
    %1086 = vmatpush1.msra.mxu0 0.0
    %1087 = vmatprep.subr.mxu0 0.0
    %1088 = vmatpush1.msra.mxu0 0.0
    %1089 = vmatprep.subr.mxu0 0.0
    %1090 = vmatpush1.msra.mxu0 0.0
    %1091 = vmatprep.subr.mxu0 0.0
    %1092 = vmatpush1.msra.mxu0 0.0
    %1093 = vmatprep.subr.mxu0 0.0
    %1094 = vmatpush1.msra.mxu0 0.0
    %1095 = vmatprep.subr.mxu0 0.0
    %1096 = vmatpush1.msra.mxu0 0.0
    %1097 = vmatprep.subr.mxu0 0.0
    %1098 = vmatpush1.msra.mxu0 0.0
    %1099 = vmatprep.subr.mxu0 0.0
    %1100 = vmatpush1.msra.mxu0 0.0
    %1101 = vmatprep.subr.mxu0 0.0
    %1102 = vmatpush1.msra.mxu0 0.0
    %1103 = vmatprep.subr.mxu0 0.0
    %1104 = vmatpush1.msra.mxu0 0.0
    %1105 = vmatprep.subr.mxu0 0.0
    %1106 = vmatpush1.msra.mxu0 0.0
    %1107 = vmatprep.subr.mxu0 0.0
    %1108 = vmatpush1.msra.mxu0 0.0
    %1109 = vmatprep.subr.mxu0 0.0
    %1110 = vmatpush1.msra.mxu0 0.0
    %1111 = vmatprep.subr.mxu0 0.0
    %1112 = vmatpush1.msra.mxu0 0.0
    %1113 = vmatprep.subr.mxu0 0.0
    %1114 = vmatpush1.msra.mxu0 0.0
    %1115 = vmatprep.subr.mxu0 0.0
    %1116 = vmatpush1.msra.mxu0 0.0
    %1117 = vmatprep.subr.mxu0 0.0
    %1118 = vmatpush1.msra.mxu0 0.0
    %1119 = vmatprep.subr.mxu0 0.0
    %1120 = vmatpush1.msra.mxu0 0.0
    %1121 = vmatprep.subr.mxu0 0.0
    %1122 = vmatpush1.msra.mxu0 0.0
    %1123 = vmatprep.subr.mxu0 0.0
    %1124 = vmatpush1.msra.mxu0 0.0
    %1125 = vmatprep.subr.mxu0 0.0
    %1126 = vmatpush1.msra.mxu0 0.0
    %1127 = vmatprep.subr.mxu0 0.0
    %1128 = vmatpush1.msra.mxu0 0.0
    %1129 = vmatprep.subr.mxu0 0.0
    %1130 = vmatpush1.msra.mxu0 0.0
    %1131 = vmatprep.subr.mxu0 0.0
    %1132 = vmatpush1.msra.mxu0 0.0
    %1133 = vmatprep.mubr.f32.mxu0 0.0
    %1134 = vmatmul.mubr.f32.gmra.mrb[0].mxu0 %v1067
    %v1135 = vpop.f32.mrb[0].mxu0
    %v1136 = vadd.f32 0.0, %v1135
    %v1137 = vpop.f32.mrb[0].mxu0
    %1138 = vdwg.mxu0
    %v1139 = vmul.f32 %v1136, %v198
    %v1141 = vsel %vm39, %v1139, 0
    %1143 = vmatprep.subr.mxu0 0.0
    %1144 = vmatpush1.msra.mxu0 %v114
    %1145 = vmatprep.subr.mxu0 0.0
    %1146 = vmatpush1.msra.mxu0 %v115
    %1147 = vmatprep.subr.mxu0 0.0
    %1148 = vmatpush1.msra.mxu0 %v116
    %1149 = vmatprep.subr.mxu0 0.0
    %1150 = vmatpush1.msra.mxu0 %v117
    %1151 = vmatprep.subr.mxu0 0.0
    %1152 = vmatpush1.msra.mxu0 0.0
    %1153 = vmatprep.subr.mxu0 0.0
    %1154 = vmatpush1.msra.mxu0 0.0
    %1155 = vmatprep.subr.mxu0 0.0
    %1156 = vmatpush1.msra.mxu0 0.0
    %1157 = vmatprep.subr.mxu0 0.0
    %1158 = vmatpush1.msra.mxu0 0.0
    %1159 = vmatprep.subr.mxu0 0.0
    %1160 = vmatpush1.msra.mxu0 0.0
    %1161 = vmatprep.subr.mxu0 0.0
    %1162 = vmatpush1.msra.mxu0 0.0
    %1163 = vmatprep.subr.mxu0 0.0
    %1164 = vmatpush1.msra.mxu0 0.0
    %1165 = vmatprep.subr.mxu0 0.0
    %1166 = vmatpush1.msra.mxu0 0.0
    %1167 = vmatprep.subr.mxu0 0.0
    %1168 = vmatpush1.msra.mxu0 0.0
    %1169 = vmatprep.subr.mxu0 0.0
    %1170 = vmatpush1.msra.mxu0 0.0
    %1171 = vmatprep.subr.mxu0 0.0
    %1172 = vmatpush1.msra.mxu0 0.0
    %1173 = vmatprep.subr.mxu0 0.0
    %1174 = vmatpush1.msra.mxu0 0.0
    %1175 = vmatprep.subr.mxu0 0.0
    %1176 = vmatpush1.msra.mxu0 0.0
    %1177 = vmatprep.subr.mxu0 0.0
    %1178 = vmatpush1.msra.mxu0 0.0
    %1179 = vmatprep.subr.mxu0 0.0
    %1180 = vmatpush1.msra.mxu0 0.0
    %1181 = vmatprep.subr.mxu0 0.0
    %1182 = vmatpush1.msra.mxu0 0.0
    %1183 = vmatprep.subr.mxu0 0.0
    %1184 = vmatpush1.msra.mxu0 0.0
    %1185 = vmatprep.subr.mxu0 0.0
    %1186 = vmatpush1.msra.mxu0 0.0
    %1187 = vmatprep.subr.mxu0 0.0
    %1188 = vmatpush1.msra.mxu0 0.0
    %1189 = vmatprep.subr.mxu0 0.0
    %1190 = vmatpush1.msra.mxu0 0.0
    %1191 = vmatprep.subr.mxu0 0.0
    %1192 = vmatpush1.msra.mxu0 0.0
    %1193 = vmatprep.subr.mxu0 0.0
    %1194 = vmatpush1.msra.mxu0 0.0
    %1195 = vmatprep.subr.mxu0 0.0
    %1196 = vmatpush1.msra.mxu0 0.0
    %1197 = vmatprep.subr.mxu0 0.0
    %1198 = vmatpush1.msra.mxu0 0.0
    %1199 = vmatprep.subr.mxu0 0.0
    %1200 = vmatpush1.msra.mxu0 0.0
    %1201 = vmatprep.subr.mxu0 0.0
    %1202 = vmatpush1.msra.mxu0 0.0
    %1203 = vmatprep.subr.mxu0 0.0
    %1204 = vmatpush1.msra.mxu0 0.0
    %1205 = vmatprep.subr.mxu0 0.0
    %1206 = vmatpush1.msra.mxu0 0.0
    %1207 = vmatprep.mubr.f32.mxu0 0.0
    %1208 = vmatmul.mubr.f32.gmra.mrb[0].mxu0 %v1141
    %v1209 = vpop.f32.mrb[0].mxu0
    %v1210 = vadd.f32 0.0, %v1209
    %v1211 = vpop.f32.mrb[0].mxu0
    %1212 = vdwg.mxu0
    %v1213 = vsel %vm274, %v1210, -inf
    %1214 = vmax.xlane.f32.xlu0 %v1213
    %v1215 = vpop.xlane.xlu0 %1214
    %v1216 = vsub.f32 %v1210, %v1215
    %v1217 = vmul.f32 %v1216, 1.442695
    %v1218 = vpow.pop %v1217
    %v1219 = vsel %vm274, %v1218, 0.0
    %1220 = vadd.xlane.f32.xlu0 %v1219
    %v1221 = vpop.xlane.xlu0 %1220
    %v1222 = vrcp.pop %v1221
    %v1223 = vmul.f32 %v1218, %v1222
    %v1225 = vsel %vm274, %v1223, 0
    %1227 = vmatprep.subr.mxu0 0.0
    %1228 = vmatpush1.msra.mxu0 %v291
    %1229 = vmatprep.subr.mxu0 0.0
    %1230 = vmatpush1.msra.mxu0 0.0
    %1231 = vmatprep.subr.mxu0 0.0
    %1232 = vmatpush1.msra.mxu0 0.0
    %1233 = vmatprep.subr.mxu0 0.0
    %1234 = vmatpush1.msra.mxu0 0.0
    %1235 = vmatprep.subr.mxu0 0.0
    %1236 = vmatpush1.msra.mxu0 0.0
    %1237 = vmatprep.subr.mxu0 0.0
    %1238 = vmatpush1.msra.mxu0 0.0
    %1239 = vmatprep.subr.mxu0 0.0
    %1240 = vmatpush1.msra.mxu0 0.0
    %1241 = vmatprep.subr.mxu0 0.0
    %1242 = vmatpush1.msra.mxu0 0.0
    %1243 = vmatprep.subr.mxu0 0.0
    %1244 = vmatpush1.msra.mxu0 0.0
    %1245 = vmatprep.subr.mxu0 0.0
    %1246 = vmatpush1.msra.mxu0 0.0
    %1247 = vmatprep.subr.mxu0 0.0
    %1248 = vmatpush1.msra.mxu0 0.0
    %1249 = vmatprep.subr.mxu0 0.0
    %1250 = vmatpush1.msra.mxu0 0.0
    %1251 = vmatprep.subr.mxu0 0.0
    %1252 = vmatpush1.msra.mxu0 0.0
    %1253 = vmatprep.subr.mxu0 0.0
    %1254 = vmatpush1.msra.mxu0 0.0
    %1255 = vmatprep.subr.mxu0 0.0
    %1256 = vmatpush1.msra.mxu0 0.0
    %1257 = vmatprep.subr.mxu0 0.0
    %1258 = vmatpush1.msra.mxu0 0.0
    %1259 = vmatprep.subr.mxu0 0.0
    %1260 = vmatpush1.msra.mxu0 0.0
    %1261 = vmatprep.subr.mxu0 0.0
    %1262 = vmatpush1.msra.mxu0 0.0
    %1263 = vmatprep.subr.mxu0 0.0
    %1264 = vmatpush1.msra.mxu0 0.0
    %1265 = vmatprep.subr.mxu0 0.0
    %1266 = vmatpush1.msra.mxu0 0.0
    %1267 = vmatprep.subr.mxu0 0.0
    %1268 = vmatpush1.msra.mxu0 0.0
    %1269 = vmatprep.subr.mxu0 0.0
    %1270 = vmatpush1.msra.mxu0 0.0
    %1271 = vmatprep.subr.mxu0 0.0
    %1272 = vmatpush1.msra.mxu0 0.0
    %1273 = vmatprep.subr.mxu0 0.0
    %1274 = vmatpush1.msra.mxu0 0.0
    %1275 = vmatprep.subr.mxu0 0.0
    %1276 = vmatpush1.msra.mxu0 0.0
    %1277 = vmatprep.subr.mxu0 0.0
    %1278 = vmatpush1.msra.mxu0 0.0
    %1279 = vmatprep.subr.mxu0 0.0
    %1280 = vmatpush1.msra.mxu0 0.0
    %1281 = vmatprep.subr.mxu0 0.0
    %1282 = vmatpush1.msra.mxu0 0.0
    %1283 = vmatprep.subr.mxu0 0.0
    %1284 = vmatpush1.msra.mxu0 0.0
    %1285 = vmatprep.subr.mxu0 0.0
    %1286 = vmatpush1.msra.mxu0 0.0
    %1287 = vmatprep.subr.mxu0 0.0
    %1288 = vmatpush1.msra.mxu0 0.0
    %1289 = vmatprep.subr.mxu0 0.0
    %1290 = vmatpush1.msra.mxu0 0.0
    %1291 = vmatprep.mubr.f32.mxu0 0.0
    %1292 = vmatmul.mubr.f32.gmra.mrb[0].mxu0 %v1225
    %v1293 = vpop.f32.mrb[0].mxu0
    %v1294 = vadd.f32 0.0, %v1293
    %v1295 = vpop.f32.mrb[0].mxu0
    %1296 = vdwg.mxu0
    %v1297 = vmul.f32 %v1294, %v364
    %v1299 = vsel %vm39, %v1297, 0
    %1301 = vmatprep.subr.mxu0 0.0
    %1302 = vmatpush1.msra.mxu0 %v119
    %1303 = vmatprep.subr.mxu0 0.0
    %1304 = vmatpush1.msra.mxu0 %v120
    %1305 = vmatprep.subr.mxu0 0.0
    %1306 = vmatpush1.msra.mxu0 %v121
    %1307 = vmatprep.subr.mxu0 0.0
    %1308 = vmatpush1.msra.mxu0 %v122
    %1309 = vmatprep.subr.mxu0 0.0
    %1310 = vmatpush1.msra.mxu0 0.0
    %1311 = vmatprep.subr.mxu0 0.0
    %1312 = vmatpush1.msra.mxu0 0.0
    %1313 = vmatprep.subr.mxu0 0.0
    %1314 = vmatpush1.msra.mxu0 0.0
    %1315 = vmatprep.subr.mxu0 0.0
    %1316 = vmatpush1.msra.mxu0 0.0
    %1317 = vmatprep.subr.mxu0 0.0
    %1318 = vmatpush1.msra.mxu0 0.0
    %1319 = vmatprep.subr.mxu0 0.0
    %1320 = vmatpush1.msra.mxu0 0.0
    %1321 = vmatprep.subr.mxu0 0.0
    %1322 = vmatpush1.msra.mxu0 0.0
    %1323 = vmatprep.subr.mxu0 0.0
    %1324 = vmatpush1.msra.mxu0 0.0
    %1325 = vmatprep.subr.mxu0 0.0
    %1326 = vmatpush1.msra.mxu0 0.0
    %1327 = vmatprep.subr.mxu0 0.0
    %1328 = vmatpush1.msra.mxu0 0.0
    %1329 = vmatprep.subr.mxu0 0.0
    %1330 = vmatpush1.msra.mxu0 0.0
    %1331 = vmatprep.subr.mxu0 0.0
    %1332 = vmatpush1.msra.mxu0 0.0
    %1333 = vmatprep.subr.mxu0 0.0
    %1334 = vmatpush1.msra.mxu0 0.0
    %1335 = vmatprep.subr.mxu0 0.0
    %1336 = vmatpush1.msra.mxu0 0.0
    %1337 = vmatprep.subr.mxu0 0.0
    %1338 = vmatpush1.msra.mxu0 0.0
    %1339 = vmatprep.subr.mxu0 0.0
    %1340 = vmatpush1.msra.mxu0 0.0
    %1341 = vmatprep.subr.mxu0 0.0
    %1342 = vmatpush1.msra.mxu0 0.0
    %1343 = vmatprep.subr.mxu0 0.0
    %1344 = vmatpush1.msra.mxu0 0.0
    %1345 = vmatprep.subr.mxu0 0.0
    %1346 = vmatpush1.msra.mxu0 0.0
    %1347 = vmatprep.subr.mxu0 0.0
    %1348 = vmatpush1.msra.mxu0 0.0
    %1349 = vmatprep.subr.mxu0 0.0
    %1350 = vmatpush1.msra.mxu0 0.0
    %1351 = vmatprep.subr.mxu0 0.0
    %1352 = vmatpush1.msra.mxu0 0.0
    %1353 = vmatprep.subr.mxu0 0.0
    %1354 = vmatpush1.msra.mxu0 0.0
    %1355 = vmatprep.subr.mxu0 0.0
    %1356 = vmatpush1.msra.mxu0 0.0
    %1357 = vmatprep.subr.mxu0 0.0
    %1358 = vmatpush1.msra.mxu0 0.0
    %1359 = vmatprep.subr.mxu0 0.0
    %1360 = vmatpush1.msra.mxu0 0.0
    %1361 = vmatprep.subr.mxu0 0.0
    %1362 = vmatpush1.msra.mxu0 0.0
    %1363 = vmatprep.subr.mxu0 0.0
    %1364 = vmatpush1.msra.mxu0 0.0
    %1365 = vmatprep.mubr.f32.mxu0 0.0
    %1366 = vmatmul.mubr.f32.gmra.mrb[0].mxu0 %v1299
    %v1367 = vpop.f32.mrb[0].mxu0
    %v1368 = vadd.f32 0.0, %v1367
    %v1369 = vpop.f32.mrb[0].mxu0
    %1370 = vdwg.mxu0
    %1372 = vrot.lane.b32.xlu0 %v1368, 24
    %v1373 = vpop.permute.xlu0 %1372
    %vm1375 = vcmask 261312
    %1376 = vst.msk [vmem:[#allocation2] sm:$0xff] %vm1375, %v1373
    %v1377 = vld [vmem:[#allocation2] sm:$0xff]
    %1378 = vst.msk [vmem:[#allocation3] sm:$0xff] %vm39, %v1377
    // Predicated region
    $region30: #{tpu_custom_call.1} parent=1 // pred_check
      _
    $region31: #{tpu_custom_call.1} parent=1 // pred_check_branch
      %1380 = sbr.rel (0) target = $region33
    $region32: #{tpu_custom_call.1} parent=1 // pred_region
      %s1382 = ssub.s32 128, 128
      %1383 = vsyncadd [#allocation4], %s1382
      %s1385 = sshll.u32 [#allocation3], 4
      %s1386 = int_to_ptr.vmem [resolvable:$true] %s1385
      %1388 = dma.vmem_to_hbm [thread:$0]  %s1386, 128, %s7, [#allocation4]
    $region33: #{tpu_custom_call.1} parent=1 // pred_fallthru
      _
    // Predicated region
    $region34: #{tpu_custom_call.1} parent=1 // pred_check
      _
    $region35: #{tpu_custom_call.1} parent=1 // pred_check_branch
      %1390 = sbr.rel (0) target = $region37
    $region36: #{tpu_custom_call.1} parent=1 // pred_region
      %1391 = dma.done [#allocation4], 128
    $region37: #{tpu_custom_call.1} parent=1 // pred_fallthru
      _
    %1392 = vsyncpa [#allocation4], 1

</llo_original>
